<compile_context>
chip_gen: v6e
topology: v6e:2x2x1
jax: 0.10.0
libtpu: 0.0.40
codegen_flags: <defaults>
</compile_context>

<pallas_src>
import functools

import jax
import jax.numpy as jnp
from jax.experimental import pallas as pl
from jax.experimental.pallas import tpu as pltpu

LANE = 128
SUBLANE = 8


def _round_up(x, m):
    return (x + m - 1) // m * m


def _device_kind():
    try:
        return jax.devices()[0].device_kind.lower()
    except Exception:
        return ""


def _default_tb(batch):
    kind = _device_kind()
    if "v7" in kind:
        # Keep >=2 grid steps so dimension_semantics=("parallel",) can use both TensorCores.
        tb = _round_up(max(pl.cdiv(batch, 2), SUBLANE), SUBLANE)
    else:
        # Single-TC chips: one big tile -> fewer ~0.35us grid-step overheads.
        tb = _round_up(max(batch, SUBLANE), SUBLANE)
    return int(min(tb, 512))  # 512 rows keeps f32 intermediates well inside v5e's 16 MiB


def _critic_kernel(x_ref, wbig_ref, w2h_ref, w3_ref, b3_ref, o_ref, *,
                   fc1_pad, relu_bf16):
    # One MXU pass:  [state | action | 1] @ [[w1, 0], [0, w2a], [b1, b2]]
    #             =  [ state@w1 + b1 | action@w2a + b2 ]       (f32 accumulation)
    y = jnp.dot(x_ref[...], wbig_ref[...], preferred_element_type=jnp.float32)

    y1 = y[:, :fc1_pad]                       # fc1 pre-activation (lane-aligned slice)
    if relu_bf16:
        h1 = jnp.maximum(y1.astype(jnp.bfloat16), 0)      # bf16-native VALU on v6e/v7x
    else:
        h1 = jnp.maximum(y1, 0.0).astype(jnp.bfloat16)     # f32 VALU path (v5e and older)

    a2 = y[:, fc1_pad:]                       # action@w2a + b2 (zeros in padded columns)

    # fc2 hidden half on the MXU; add action half (+ bias already folded in); ReLU.
    h2 = jnp.dot(h1, w2h_ref[...], preferred_element_type=jnp.float32) + a2
    h2 = jnp.maximum(h2, 0.0)                 # (tb, fc2_pad) f32

    # fc3 scalar head: VPU multiply + XLU lane-reduce; bias from SMEM.
    col = jnp.sum(h2 * w3_ref[...], axis=-1, keepdims=True) + b3_ref[0]   # (tb, 1)
    # Lane-dense store: transpose the column to a (1, tb) row (XLU slot is idle here).
    o_ref[...] = col.T[None].astype(o_ref.dtype)                           # (1, 1, tb)


def init_params(key, state_dim, action_dim, fc1_units, fc2_units):
    """PyTorch nn.Linear default init; fc3 weight overridden to U(-0.003, 0.003)."""
    ks = jax.random.split(key, 6)

    def uni(k, shape, bound):
        return jax.random.uniform(k, shape, jnp.float32, -bound, bound)

    bnd1 = state_dim ** -0.5
    w1 = uni(ks[0], (state_dim, fc1_units), bnd1)         # stored (in, out): x @ W + b
    b1 = uni(ks[1], (1, fc1_units), bnd1)

    fan2 = fc1_units + action_dim
    bnd2 = fan2 ** -0.5
    w2 = uni(ks[2], (fan2, fc2_units), bnd2)
    b2 = uni(ks[3], (1, fc2_units), bnd2)

    w3 = uni(ks[4], (fc2_units, 1), 0.003)
    b3 = uni(ks[5], (1, 1), fc2_units ** -0.5)
    return dict(w1=w1, b1=b1, w2=w2, b2=b2, w3=w3, b3=b3)


def pack_params(params, compute_dtype=jnp.bfloat16):
    """Fold fc1 + action-half-of-fc2 + both biases into one weight; pad fc1/fc2 to lane multiples."""
    w1, b1, w2, b2, w3, b3 = (params[k] for k in ("w1", "b1", "w2", "b2", "w3", "b3"))
    s_dim, fc1 = w1.shape
    fan2, fc2 = w2.shape
    a_dim = fan2 - fc1
    fc1_pad = _round_up(fc1, LANE)
    fc2_pad = _round_up(fc2, LANE)

    w2h, w2a = w2[:fc1], w2[fc1:]

    K = s_dim + a_dim + 1                     # +1: constant ones column carries the biases
    # W_big = [[w1, 0], [0, w2a], [b1, b2]]
    wbig = jnp.zeros((K, fc1_pad + fc2_pad), jnp.float32)
    wbig = wbig.at[:s_dim, :fc1].set(w1)
    wbig = wbig.at[s_dim:s_dim + a_dim, fc1_pad:fc1_pad + fc2].set(w2a)
    wbig = wbig.at[K - 1, :fc1].set(b1[0])
    wbig = wbig.at[K - 1, fc1_pad:fc1_pad + fc2].set(b2[0])

    w2h_pad = jnp.zeros((fc1_pad, fc2_pad), jnp.float32).at[:fc1, :fc2].set(w2h)
    w3_pad = jnp.zeros((1, fc2_pad), jnp.float32).at[:, :fc2].set(w3[:, 0])

    return dict(
        wbig=wbig.astype(compute_dtype),
        w2h=w2h_pad.astype(compute_dtype),
        w3=w3_pad,                                  # f32 head weights (VPU)
        b3=b3.reshape(1).astype(jnp.float32),       # scalar bias via SMEM
        dims=(s_dim, a_dim, fc1, fc2, fc1_pad, fc2_pad),
    )


def critic_forward(state, action, packed, *, tb=None):
    """state: [B, state_dim], action: [B, action_dim] -> [B, 1] (f32)."""
    s_dim, a_dim, fc1, fc2, fc1_pad, fc2_pad = packed["dims"]
    B = state.shape[0]
    if tb is None:
        tb = _default_tb(B)
    grid = pl.cdiv(B, tb)                     # ragged last block handled by Pallas masking

    dtype = packed["wbig"].dtype
    x = jnp.concatenate(
        [state.astype(dtype), action.astype(dtype), jnp.ones((B, 1), dtype)], axis=1)

    kind = _device_kind()
    kernel = functools.partial(
        _critic_kernel, fc1_pad=fc1_pad,
        relu_bf16=("v6" in kind) or ("v7" in kind))

    K = s_dim + a_dim + 1
    rows = grid * tb
    flops = 2 * rows * (K * (fc1_pad + fc2_pad) + fc1_pad * fc2_pad + fc2_pad)
    bytes_accessed = (
        x.size * x.dtype.itemsize
        + packed["wbig"].size * packed["wbig"].dtype.itemsize
        + packed["w2h"].size * packed["w2h"].dtype.itemsize
        + packed["w3"].size * 4 + 4
        + rows * 4)

    def resident(arr):  # whole array, constant index_map -> VMEM-resident across grid steps
        return pl.BlockSpec(arr.shape, lambda i: (0,) * arr.ndim)

    out = pl.pallas_call(
        kernel,
        out_shape=jax.ShapeDtypeStruct((grid, 1, tb), jnp.float32),
        grid=(grid,),
        in_specs=[
            pl.BlockSpec((tb, K), lambda i: (i, 0)),           # streamed batch tile
            resident(packed["wbig"]),
            resident(packed["w2h"]),
            resident(packed["w3"]),
            pl.BlockSpec(memory_space=pltpu.MemorySpace.SMEM),  # scalar b3
        ],
        out_specs=pl.BlockSpec((1, 1, tb), lambda i: (i, 0, 0)),
        compiler_params=pltpu.CompilerParams(
            dimension_semantics=("parallel",),                  # megacore on v7x
        ),
        cost_estimate=pl.CostEstimate(flops=flops, transcendentals=0,
                                      bytes_accessed=bytes_accessed),
    )(x, packed["wbig"], packed["w2h"], packed["w3"], packed["b3"])

    return out.reshape(grid * tb, 1)[:B]


def critic_ref(state, action, p):
    """Pure-JAX f32 reference reproducing the PyTorch forward exactly."""
    h1 = jax.nn.relu(state @ p["w1"] + p["b1"])
    x = jnp.concatenate([h1, action], axis=1)
    h2 = jax.nn.relu(x @ p["w2"] + p["b2"])
    return h2 @ p["w3"] + p["b3"]


if __name__ == "__main__":
    # Module defaults (fc1=400, fc2=300); batch chosen to exercise tiling + ragged masking.
    B, STATE_DIM, ACTION_DIM = 200, 33, 4
    FC1_UNITS, FC2_UNITS = 400, 300

    key = jax.random.PRNGKey(0)
    k_s, k_a, k_p = jax.random.split(key, 3)

    state = jax.random.normal(k_s, (B, STATE_DIM), jnp.float32)
    action = jax.random.normal(k_a, (B, ACTION_DIM), jnp.float32)
    params = init_params(k_p, STATE_DIM, ACTION_DIM, FC1_UNITS, FC2_UNITS)

    packed = pack_params(params, compute_dtype=jnp.bfloat16)
    out = jax.block_until_ready(critic_forward(state, action, packed))

    ref = critic_ref(state, action, params)
    assert out.shape == (B, 1), out.shape
    # bf16 MXU weights/activations vs f32 reference -> ~1e-3 deviation; tolerance relaxed.
    assert jnp.allclose(out, ref, atol=1e-2, rtol=1e-2), \
        float(jnp.max(jnp.abs(out - ref)))

    print("KERNEL_OK")
</pallas_src>

<mosaic_0001>
module attributes {stable_mosaic.version = 11 : i64} {
  func.func @_critic_kernel(%arg0: i32, %arg1: memref<200x38xbf16, #tpu.memory_space<vmem>>, %arg2: memref<38x896xbf16, #tpu.memory_space<vmem>>, %arg3: memref<512x384xbf16, #tpu.memory_space<vmem>>, %arg4: memref<1x384xf32, #tpu.memory_space<vmem>>, %arg5: memref<1xf32, #tpu.memory_space<smem>>, %arg6: memref<1x1x200xf32, #tpu.memory_space<vmem>>) attributes {dimension_semantics = [#tpu.dimension_semantics<parallel>], iteration_bounds = array<i64: 1>, scalar_prefetch = 0 : i64, scratch_operands = 0 : i64, tpu.core_type = #tpu.core_type<tc>, window_params = [{transform_indices = @transform_0, window_bounds = array<i64: 200, 38>}, {pipeline_mode = #tpu.pipeline_mode<synchronous>, transform_indices = @transform_1, window_bounds = array<i64: 38, 896>}, {pipeline_mode = #tpu.pipeline_mode<synchronous>, transform_indices = @transform_2, window_bounds = array<i64: 512, 384>}, {pipeline_mode = #tpu.pipeline_mode<synchronous>, transform_indices = @transform_3, window_bounds = array<i64: 1, 384>}, {transform_indices = @transform_4, window_bounds = array<i64: 1>}, {transform_indices = @transform_5, window_bounds = array<i64: 1, 1, 200>}]} {
    %c0 = arith.constant 0 : index
    %c0_0 = arith.constant 0 : index
    %0 = vector.load %arg1[%c0, %c0_0] : memref<200x38xbf16, #tpu.memory_space<vmem>>, vector<200x38xbf16>
    %c0_1 = arith.constant 0 : index
    %c0_2 = arith.constant 0 : index
    %1 = vector.load %arg2[%c0_1, %c0_2] : memref<38x896xbf16, #tpu.memory_space<vmem>>, vector<38x896xbf16>
    %cst = arith.constant dense<0.000000e+00> : vector<200x896xf32>
    %2 = tpu.matmul %0, %1, %cst {dimension_numbers = #tpu.dot_dimension_numbers<[1], [0], [0], [1], [0, 0, 1, 1], [], []>} : vector<200x38xbf16>, vector<38x896xbf16>, vector<200x896xf32> -> vector<200x896xf32>
    %3 = vector.extract_strided_slice %2 {offsets = [0, 0], sizes = [200, 512], strides = [1, 1]} : vector<200x896xf32> to vector<200x512xf32>
    %cst_3 = arith.constant 0.000000e+00 : f32
    %4 = vector.broadcast %cst_3 : f32 to vector<200x512xf32>
    %5 = arith.maximumf %3, %4 : vector<200x512xf32>
    %6 = arith.truncf %5 : vector<200x512xf32> to vector<200x512xbf16>
    %7 = vector.extract_strided_slice %2 {offsets = [0, 512], sizes = [200, 384], strides = [1, 1]} : vector<200x896xf32> to vector<200x384xf32>
    %c0_4 = arith.constant 0 : index
    %c0_5 = arith.constant 0 : index
    %8 = vector.load %arg3[%c0_4, %c0_5] : memref<512x384xbf16, #tpu.memory_space<vmem>>, vector<512x384xbf16>
    %cst_6 = arith.constant dense<0.000000e+00> : vector<200x384xf32>
    %9 = tpu.matmul %6, %8, %cst_6 {dimension_numbers = #tpu.dot_dimension_numbers<[1], [0], [0], [1], [0, 0, 1, 1], [], []>} : vector<200x512xbf16>, vector<512x384xbf16>, vector<200x384xf32> -> vector<200x384xf32>
    %10 = arith.addf %9, %7 : vector<200x384xf32>
    %cst_7 = arith.constant 0.000000e+00 : f32
    %11 = vector.broadcast %cst_7 : f32 to vector<200x384xf32>
    %12 = arith.maximumf %10, %11 : vector<200x384xf32>
    %c0_8 = arith.constant 0 : index
    %c0_9 = arith.constant 0 : index
    %13 = vector.load %arg4[%c0_8, %c0_9] : memref<1x384xf32, #tpu.memory_space<vmem>>, vector<1x384xf32>
    %14 = vector.broadcast %13 : vector<1x384xf32> to vector<200x384xf32>
    %15 = arith.mulf %12, %14 : vector<200x384xf32>
    %cst_10 = arith.constant dense<0.000000e+00> : vector<200xf32>
    %16 = vector.multi_reduction <add>, %15, %cst_10 [1] : vector<200x384xf32> to vector<200xf32>
    %17 = vector.shape_cast %16 : vector<200xf32> to vector<200x1xf32>
    %c0_11 = arith.constant 0 : index
    %18 = memref.load %arg5[%c0_11] : memref<1xf32, #tpu.memory_space<smem>>
    %19 = vector.broadcast %18 : f32 to vector<200x1xf32>
    %20 = arith.addf %17, %19 : vector<200x1xf32>
    %21 = tpu.transpose %20, [1, 0] : vector<200x1xf32> -> vector<1x200xf32>
    %22 = vector.shape_cast %21 : vector<1x200xf32> to vector<1x1x200xf32>
    %c0_12 = arith.constant 0 : index
    %c0_13 = arith.constant 0 : index
    %c0_14 = arith.constant 0 : index
    %23 = vector.load %arg6[%c0_12, %c0_13, %c0_14] : memref<1x1x200xf32, #tpu.memory_space<vmem>>, vector<1x1x200xf32>
    tpu.vector_store %arg6[%c0_12, %c0_13, %c0_14], %22 {strides = array<i32>} : memref<1x1x200xf32, #tpu.memory_space<vmem>>, vector<1x1x200xf32>,
    return
  }
  func.func @transform_0(%arg0: i32) -> (i32, i32) {
    %c0_i32 = arith.constant 0 : i32
    %c0_i32_0 = arith.constant 0 : i32
    return %arg0, %c0_i32 : i32, i32
  }
  func.func @transform_1(%arg0: i32) -> (i32, i32) {
    %c0_i32 = arith.constant 0 : i32
    %c0_i32_0 = arith.constant 0 : i32
    %c0_i32_1 = arith.constant 0 : i32
    return %c0_i32, %c0_i32_0 : i32, i32
  }
  func.func @transform_2(%arg0: i32) -> (i32, i32) {
    %c0_i32 = arith.constant 0 : i32
    %c0_i32_0 = arith.constant 0 : i32
    %c0_i32_1 = arith.constant 0 : i32
    return %c0_i32, %c0_i32_0 : i32, i32
  }
  func.func @transform_3(%arg0: i32) -> (i32, i32) {
    %c0_i32 = arith.constant 0 : i32
    %c0_i32_0 = arith.constant 0 : i32
    %c0_i32_1 = arith.constant 0 : i32
    return %c0_i32, %c0_i32_0 : i32, i32
  }
  func.func @transform_4(%arg0: i32) -> i32 {
    %c0_i32 = arith.constant 0 : i32
    %c0_i32_0 = arith.constant 0 : i32
    return %c0_i32 : i32
  }
  func.func @transform_5(%arg0: i32) -> (i32, i32, i32) {
    %c0_i32 = arith.constant 0 : i32
    %c0_i32_0 = arith.constant 0 : i32
    %c0_i32_1 = arith.constant 0 : i32
    return %arg0, %c0_i32, %c0_i32_0 : i32, i32, i32
  }
}

</mosaic_0001>

<llo_original>
// kernel: tpu_custom_call.1
$region0: #{tpu_custom_call.1}
  #allocation0 [shape = 'u32[]', space=smem, size = 0x4, offset = 0x4, fixed_abs, tag = 'smem constant byte address 0x4 - core index']
  #allocation1 [shape = 'u32[144,128]{1,0:T(1,128)}', space=vmem, size = 0x12000, scoped, tag = 'internal scratch']
  #allocation2 [shape = 'f32[1]{0:T(128)S(6)}', space=smem, size = 0x200, scoped, tag = 'scoped memory for tpu_custom_call.1']
  %s0 = inlined_call_operand.vmem [shape: bf16[200,38], index: 0, kind: input, shape index: {}]
  %s1 = inlined_call_operand.vmem [shape: bf16[38,896], index: 1, kind: input, shape index: {}]
  %s2 = inlined_call_operand.hbm [shape: bf16[512,384], index: 2, kind: input, shape index: {}]
  %s3 = inlined_call_operand.vmem [shape: f32[1,384], index: 3, kind: input, shape index: {}]
  %s4 = inlined_call_operand.<no memory space> [shape: f32[1], index: 4, kind: input, shape index: {}]
  %s5 = inlined_call_operand.hbm [shape: f32[1,1,200], index: 5, kind: output, shape index: {}]
  %s6 = sld [smem:[#allocation0]]
  $region34: #{tpu_custom_call.1} parent=0
    _
  %s8 = ssub.s32 1, %s6
  %s9 = scalar_select 0, %s8, %s6
  %10 = sst [smem:[#allocation2]] %s4
  $region1: #{tpu_custom_call.1} parent=0
    #allocation3 [shape = 'u8[393216]{0}', space=vmem, size = 0x60000, scoped, tag = 'input window, operand 2, single buffered']
    #allocation4 [shape = 's32[1]{0}', space=sflag, size = 0x4, scoped, tag = 'scoped memory for tpu_custom_call.1']
    #allocation5 [shape = 's32[1]{0}', space=sflag, size = 0x4, scoped, tag = 'scoped memory for tpu_custom_call.1']
    #allocation6 [shape = 'u8[1024]{0}', space=vmem, size = 0x400, scoped, tag = 'output window, operand 0, single buffered']
    %11 = vsyncpa [#allocation4], 0
    %12 = vsyncpa [#allocation5], 0
    // Predicated region
    $region2: #{tpu_custom_call.1} parent=1 // pred_check
      _
    $region3: #{tpu_custom_call.1} parent=1 // pred_check_branch
      %14 = sbr.rel (0) target = $region5
    $region4: #{tpu_custom_call.1} parent=1 // pred_region
      _
    $region5: #{tpu_custom_call.1} parent=1 // pred_fallthru
      _
    // Predicated region
    $region6: #{tpu_custom_call.1} parent=1 // pred_check
      _
    $region7: #{tpu_custom_call.1} parent=1 // pred_check_branch
      %16 = sbr.rel (0) target = $region9
    $region8: #{tpu_custom_call.1} parent=1 // pred_region
      _
    $region9: #{tpu_custom_call.1} parent=1 // pred_fallthru
      _
    // Predicated region
    $region10: #{tpu_custom_call.1} parent=1 // pred_check
      _
    $region11: #{tpu_custom_call.1} parent=1 // pred_check_branch
      %18 = sbr.rel (0) target = $region13
    $region12: #{tpu_custom_call.1} parent=1 // pred_region
      %s20 = ssub.s32 12288, 12288
      %21 = vsyncadd [#allocation4], %s20
      %s22 = sshll.u32 [#allocation3], 4
      %s23 = int_to_ptr.vmem [resolvable:$true] %s22
      %28 = dma.hbm_to_vmem [thread:$0]  %s2, 12288, %s23, [#allocation4], 192, 192, 12
    $region13: #{tpu_custom_call.1} parent=1 // pred_fallthru
      _
    // Predicated region
    $region14: #{tpu_custom_call.1} parent=1 // pred_check
      _
    $region15: #{tpu_custom_call.1} parent=1 // pred_check_branch
      %30 = sbr.rel (0) target = $region17
    $region16: #{tpu_custom_call.1} parent=1 // pred_region
      _
    $region17: #{tpu_custom_call.1} parent=1 // pred_fallthru
      _
    // Predicated region
    $region18: #{tpu_custom_call.1} parent=1 // pred_check
      _
    $region19: #{tpu_custom_call.1} parent=1 // pred_check_branch
      %32 = sbr.rel (0) target = $region21
    $region20: #{tpu_custom_call.1} parent=1 // pred_region
      _
    $region21: #{tpu_custom_call.1} parent=1 // pred_fallthru
      _
    // Predicated region
    $region22: #{tpu_custom_call.1} parent=1 // pred_check
      _
    $region23: #{tpu_custom_call.1} parent=1 // pred_check_branch
      %34 = sbr.rel (0) target = $region25
    $region24: #{tpu_custom_call.1} parent=1 // pred_region
      %35 = dma.done [#allocation4], 12288
    $region25: #{tpu_custom_call.1} parent=1 // pred_fallthru
      _
    %v37 = vld [vmem:[%s0] sm:$0xf]
    %v38 = vld [vmem:[%s0 + $0x4] sm:$0xf]
    %v39 = vld [vmem:[%s0 + $0x8] sm:$0xf]
    %v40 = vld [vmem:[%s0 + $0xc] sm:$0xf]
    %v41 = vld [vmem:[%s0 + $0x10] sm:$0xf]
    %v42 = vld [vmem:[%s0 + $0x14] sm:$0xf]
    %v43 = vld [vmem:[%s0 + $0x18] sm:$0xf]
    %v44 = vld [vmem:[%s0 + $0x1c] sm:$0xf]
    %v45 = vld [vmem:[%s0 + $0x20] sm:$0xf]
    %v46 = vld [vmem:[%s0 + $0x24] sm:$0xf]
    %v47 = vld [vmem:[%s0 + $0x28] sm:$0xf]
    %v48 = vld [vmem:[%s0 + $0x2c] sm:$0xf]
    %v49 = vld [vmem:[%s0 + $0x30] sm:$0xf]
    %v50 = vld [vmem:[%s0 + $0x34] sm:$0xf]
    %v51 = vld [vmem:[%s0 + $0x38] sm:$0xf]
    %v52 = vld [vmem:[%s0 + $0x3c] sm:$0xf]
    %v53 = vld [vmem:[%s0 + $0x40] sm:$0xf]
    %v54 = vld [vmem:[%s0 + $0x44] sm:$0xf]
    %v55 = vld [vmem:[%s0 + $0x48] sm:$0xf]
    %v56 = vld [vmem:[%s0 + $0x4c] sm:$0xf]
    %v57 = vld [vmem:[%s0 + $0x50] sm:$0xf]
    %v58 = vld [vmem:[%s0 + $0x54] sm:$0xf]
    %v59 = vld [vmem:[%s0 + $0x58] sm:$0xf]
    %v60 = vld [vmem:[%s0 + $0x5c] sm:$0xf]
    %v61 = vld [vmem:[%s0 + $0x60] sm:$0xf]
    %v62 = vld [vmem:[%s1] sm:$0xff]
    %v63 = vld [vmem:[%s1 + $0x8] sm:$0xff]
    %v64 = vld [vmem:[%s1 + $0x10] sm:$0xff]
    %v65 = vld [vmem:[%s1 + $0x18] sm:$0xf]
    %v66 = vld [vmem:[%s1 + $0x1c] sm:$0xff]
    %v67 = vld [vmem:[%s1 + $0x24] sm:$0xff]
    %v68 = vld [vmem:[%s1 + $0x2c] sm:$0xff]
    %v69 = vld [vmem:[%s1 + $0x34] sm:$0xf]
    %v70 = vld [vmem:[%s1 + $0x38] sm:$0xff]
    %v71 = vld [vmem:[%s1 + $0x40] sm:$0xff]
    %v72 = vld [vmem:[%s1 + $0x48] sm:$0xff]
    %v73 = vld [vmem:[%s1 + $0x50] sm:$0xf]
    %v74 = vld [vmem:[%s1 + $0x54] sm:$0xff]
    %v75 = vld [vmem:[%s1 + $0x5c] sm:$0xff]
    %v76 = vld [vmem:[%s1 + $0x64] sm:$0xff]
    %v77 = vld [vmem:[%s1 + $0x6c] sm:$0xf]
    %v78 = vld [vmem:[%s1 + $0x70] sm:$0x77]
    %v79 = vld [vmem:[%s1 + $0x78] sm:$0x77]
    %v80 = vld [vmem:[%s1 + $0x80] sm:$0x77]
    %v81 = vld [vmem:[%s1 + $0x88] sm:$0x7]
    %v107 = vunpack.c.l.b16 %v37
    %v108 = vunpack.c.l.b16 %v38
    %v109 = vunpack.c.l.b16 %v39
    %v110 = vunpack.c.l.b16 %v40
    %v111 = vunpack.c.l.b16 %v41
    %v112 = vunpack.c.l.b16 %v42
    %v113 = vunpack.c.l.b16 %v43
    %v114 = vunpack.c.l.b16 %v44
    %v115 = vunpack.c.l.b16 %v45
    %v116 = vunpack.c.l.b16 %v46
    %v117 = vunpack.c.l.b16 %v47
    %v118 = vunpack.c.l.b16 %v48
    %v119 = vunpack.c.l.b16 %v49
    %v120 = vunpack.c.l.b16 %v50
    %v121 = vunpack.c.l.b16 %v51
    %v122 = vunpack.c.l.b16 %v52
    %v123 = vunpack.c.l.b16 %v53
    %v124 = vunpack.c.l.b16 %v54
    %v125 = vunpack.c.l.b16 %v55
    %v126 = vunpack.c.l.b16 %v56
    %v127 = vunpack.c.l.b16 %v57
    %v128 = vunpack.c.l.b16 %v58
    %v129 = vunpack.c.l.b16 %v59
    %v130 = vunpack.c.l.b16 %v60
    %v131 = vunpack.c.l.b16 %v61
    %v132 = vpack.c.b16 %v108, %v107
    %v133 = vpack.c.b16 %v110, %v109
    %v134 = vpack.c.b16 %v112, %v111
    %v135 = vpack.c.b16 %v114, %v113
    %v136 = vpack.c.b16 %v116, %v115
    %v137 = vpack.c.b16 %v118, %v117
    %v138 = vpack.c.b16 %v120, %v119
    %v139 = vpack.c.b16 %v122, %v121
    %v140 = vpack.c.b16 %v124, %v123
    %v141 = vpack.c.b16 %v126, %v125
    %v142 = vpack.c.b16 %v128, %v127
    %v143 = vpack.c.b16 %v130, %v129
    %v144 = vpack.c.b16 %v131, %v131
    %v165 = vunpack.c.l.b16 %v62
    %v166 = vunpack.c.h.b16 %v62
    %v167 = vunpack.c.l.b16 %v63
    %v168 = vunpack.c.h.b16 %v63
    %v169 = vunpack.c.l.b16 %v64
    %v170 = vunpack.c.h.b16 %v64
    %v171 = vunpack.c.l.b16 %v65
    %v172 = vunpack.c.l.b16 %v66
    %v173 = vunpack.c.h.b16 %v66
    %v174 = vunpack.c.l.b16 %v67
    %v175 = vunpack.c.h.b16 %v67
    %v176 = vunpack.c.l.b16 %v68
    %v177 = vunpack.c.h.b16 %v68
    %v178 = vunpack.c.l.b16 %v69
    %v179 = vunpack.c.l.b16 %v70
    %v180 = vunpack.c.h.b16 %v70
    %v181 = vunpack.c.l.b16 %v71
    %v182 = vunpack.c.h.b16 %v71
    %v183 = vunpack.c.l.b16 %v72
    %v184 = vunpack.c.h.b16 %v72
    %v185 = vunpack.c.l.b16 %v73
    %v186 = vunpack.c.l.b16 %v74
    %v187 = vunpack.c.h.b16 %v74
    %v188 = vunpack.c.l.b16 %v75
    %v189 = vunpack.c.h.b16 %v75
    %v190 = vunpack.c.l.b16 %v76
    %v191 = vunpack.c.h.b16 %v76
    %v192 = vunpack.c.l.b16 %v77
    %v193 = vunpack.c.l.b16 %v78
    %v194 = vunpack.c.h.b16 %v78
    %v195 = vunpack.c.l.b16 %v79
    %v196 = vunpack.c.h.b16 %v79
    %v197 = vunpack.c.l.b16 %v80
    %v198 = vunpack.c.h.b16 %v80
    %v199 = vunpack.c.l.b16 %v81
    %v200 = vpack.c.b16 %v172, %v165
    %v201 = vpack.c.b16 %v173, %v166
    %v202 = vpack.c.b16 %v174, %v167
    %v203 = vpack.c.b16 %v175, %v168
    %v204 = vpack.c.b16 %v176, %v169
    %v205 = vpack.c.b16 %v177, %v170
    %v206 = vpack.c.b16 %v178, %v171
    %v207 = vpack.c.b16 %v186, %v179
    %v208 = vpack.c.b16 %v187, %v180
    %v209 = vpack.c.b16 %v188, %v181
    %v210 = vpack.c.b16 %v189, %v182
    %v211 = vpack.c.b16 %v190, %v183
    %v212 = vpack.c.b16 %v191, %v184
    %v213 = vpack.c.b16 %v192, %v185
    %v214 = vpack.c.b16 %v193, %v193
    %v215 = vpack.c.b16 %v194, %v194
    %v216 = vpack.c.b16 %v195, %v195
    %v217 = vpack.c.b16 %v196, %v196
    %v218 = vpack.c.b16 %v197, %v197
    %v219 = vpack.c.b16 %v198, %v198
    %v220 = vpack.c.b16 %v199, %v199
    %vm235 = vcmask 310272
    %v237 = vsel %vm235, %v132, 0
    %v240 = vsel %vm235, %v133, 0
    %v243 = vsel %vm235, %v134, 0
    %v246 = vsel %vm235, %v135, 0
    %v249 = vsel %vm235, %v136, 0
    %v252 = vsel %vm235, %v137, 0
    %v255 = vsel %vm235, %v138, 0
    %v258 = vsel %vm235, %v139, 0
    %v261 = vsel %vm235, %v140, 0
    %v264 = vsel %vm235, %v141, 0
    %v267 = vsel %vm235, %v142, 0
    %v270 = vsel %vm235, %v143, 0
    %v273 = vsel %vm235, %v144, 0
    %vm275 = vcmask 1042432
    %v277 = vsel %vm275, %v214, 0
    %v280 = vsel %vm275, %v215, 0
    %v283 = vsel %vm275, %v216, 0
    %v286 = vsel %vm275, %v217, 0
    %v289 = vsel %vm275, %v218, 0
    %v292 = vsel %vm275, %v219, 0
    %v295 = vsel %vm275, %v220, 0
    %297 = vmatprep.subr.bf16.mxu0 0
    %298 = vmatpush1.bf16.msra.mxu0 0
    %299 = vmatprep.subr.bf16.mxu0 0
    %300 = vmatpush1.bf16.msra.mxu0 0
    %301 = vmatprep.subr.bf16.mxu0 0
    %302 = vmatpush1.bf16.msra.mxu0 0
    %303 = vmatprep.subr.bf16.mxu0 0
    %304 = vmatpush1.bf16.msra.mxu0 0
    %305 = vmatprep.subr.bf16.mxu0 0
    %306 = vmatpush1.bf16.msra.mxu0 0
    %307 = vmatprep.subr.bf16.mxu0 %v280
    %308 = vmatpush1.bf16.msra.mxu0 %v277
    %309 = vmatprep.subr.bf16.mxu0 %v208
    %310 = vmatpush1.bf16.msra.mxu0 %v207
    %311 = vmatprep.subr.bf16.mxu0 %v201
    %312 = vmatpush1.bf16.msra.mxu0 %v200
    %313 = vmatprep.subr.bf16.mxu0 0
    %314 = vmatpush2.bf16.msra.mxu0 0
    %315 = vmatprep.subr.bf16.mxu0 0
    %316 = vmatpush2.bf16.msra.mxu0 0
    %317 = vmatprep.subr.bf16.mxu0 0
    %318 = vmatpush2.bf16.msra.mxu0 0
    %319 = vmatprep.subr.bf16.mxu0 0
    %320 = vmatpush2.bf16.msra.mxu0 0
    %321 = vmatprep.subr.bf16.mxu0 0
    %322 = vmatpush2.bf16.msra.mxu0 0
    %323 = vmatprep.subr.bf16.mxu0 0
    %324 = vmatpush2.bf16.msra.mxu0 0
    %325 = vmatprep.subr.bf16.mxu0 0
    %326 = vmatpush2.bf16.msra.mxu0 0
    %327 = vmatprep.subr.bf16.mxu0 0
    %328 = vmatpush2.bf16.msra.mxu0 0
    %329 = vmatprep.mubr.bf16.mxu0 0
    %330 = vmatmul.mubr.bf16.gmra.mxu0 %v237
    %v331 = vpop.f32.mrf.mxu0
    %v332 = vadd.f32 0.0, %v331
    %v333 = vpop.f32.mrf.mxu0
    %v334 = vadd.f32 0.0, %v333
    %v335 = vpop.f32.mrf.mxu0
    %v336 = vadd.f32 0.0, %v335
    %v337 = vpop.f32.mrf.mxu0
    %v338 = vadd.f32 0.0, %v337
    %339 = vmatprep.mubr.bf16.mxu0 0
    %340 = vmatmul.mubr.bf16.gmra.mxu0 %v240
    %v341 = vpop.f32.mrf.mxu0
    %v342 = vadd.f32 0.0, %v341
    %v343 = vpop.f32.mrf.mxu0
    %v344 = vadd.f32 0.0, %v343
    %v345 = vpop.f32.mrf.mxu0
    %v346 = vadd.f32 0.0, %v345
    %v347 = vpop.f32.mrf.mxu0
    %v348 = vadd.f32 0.0, %v347
    %349 = vmatprep.mubr.bf16.mxu0 0
    %350 = vmatmul.mubr.bf16.gmra.mxu0 %v243
    %v351 = vpop.f32.mrf.mxu0
    %v352 = vadd.f32 0.0, %v351
    %v353 = vpop.f32.mrf.mxu0
    %v354 = vadd.f32 0.0, %v353
    %v355 = vpop.f32.mrf.mxu0
    %v356 = vadd.f32 0.0, %v355
    %v357 = vpop.f32.mrf.mxu0
    %v358 = vadd.f32 0.0, %v357
    %359 = vmatprep.mubr.bf16.mxu0 0
    %360 = vmatmul.mubr.bf16.gmra.mxu0 %v246
    %v361 = vpop.f32.mrf.mxu0
    %v362 = vadd.f32 0.0, %v361
    %v363 = vpop.f32.mrf.mxu0
    %v364 = vadd.f32 0.0, %v363
    %v365 = vpop.f32.mrf.mxu0
    %v366 = vadd.f32 0.0, %v365
    %v367 = vpop.f32.mrf.mxu0
    %v368 = vadd.f32 0.0, %v367
    %369 = vmatprep.mubr.bf16.mxu0 0
    %370 = vmatmul.mubr.bf16.gmra.mxu0 %v249
    %v371 = vpop.f32.mrf.mxu0
    %v372 = vadd.f32 0.0, %v371
    %v373 = vpop.f32.mrf.mxu0
    %v374 = vadd.f32 0.0, %v373
    %v375 = vpop.f32.mrf.mxu0
    %v376 = vadd.f32 0.0, %v375
    %v377 = vpop.f32.mrf.mxu0
    %v378 = vadd.f32 0.0, %v377
    %379 = vmatprep.mubr.bf16.mxu0 0
    %380 = vmatmul.mubr.bf16.gmra.mxu0 %v252
    %v381 = vpop.f32.mrf.mxu0
    %v382 = vadd.f32 0.0, %v381
    %v383 = vpop.f32.mrf.mxu0
    %v384 = vadd.f32 0.0, %v383
    %v385 = vpop.f32.mrf.mxu0
    %v386 = vadd.f32 0.0, %v385
    %v387 = vpop.f32.mrf.mxu0
    %v388 = vadd.f32 0.0, %v387
    %389 = vmatprep.mubr.bf16.mxu0 0
    %390 = vmatmul.mubr.bf16.gmra.mxu0 %v255
    %v391 = vpop.f32.mrf.mxu0
    %v392 = vadd.f32 0.0, %v391
    %v393 = vpop.f32.mrf.mxu0
    %v394 = vadd.f32 0.0, %v393
    %v395 = vpop.f32.mrf.mxu0
    %v396 = vadd.f32 0.0, %v395
    %v397 = vpop.f32.mrf.mxu0
    %v398 = vadd.f32 0.0, %v397
    %399 = vmatprep.mubr.bf16.mxu0 0
    %400 = vmatmul.mubr.bf16.gmra.mxu0 %v258
    %v401 = vpop.f32.mrf.mxu0
    %v402 = vadd.f32 0.0, %v401
    %v403 = vpop.f32.mrf.mxu0
    %v404 = vadd.f32 0.0, %v403
    %v405 = vpop.f32.mrf.mxu0
    %v406 = vadd.f32 0.0, %v405
    %v407 = vpop.f32.mrf.mxu0
    %v408 = vadd.f32 0.0, %v407
    %409 = vmatprep.mubr.bf16.mxu0 0
    %410 = vmatmul.mubr.bf16.gmra.mxu0 %v261
    %v411 = vpop.f32.mrf.mxu0
    %v412 = vadd.f32 0.0, %v411
    %v413 = vpop.f32.mrf.mxu0
    %v414 = vadd.f32 0.0, %v413
    %v415 = vpop.f32.mrf.mxu0
    %v416 = vadd.f32 0.0, %v415
    %v417 = vpop.f32.mrf.mxu0
    %v418 = vadd.f32 0.0, %v417
    %419 = vmatprep.mubr.bf16.mxu0 0
    %420 = vmatmul.mubr.bf16.gmra.mxu0 %v264
    %v421 = vpop.f32.mrf.mxu0
    %v422 = vadd.f32 0.0, %v421
    %v423 = vpop.f32.mrf.mxu0
    %v424 = vadd.f32 0.0, %v423
    %v425 = vpop.f32.mrf.mxu0
    %v426 = vadd.f32 0.0, %v425
    %v427 = vpop.f32.mrf.mxu0
    %v428 = vadd.f32 0.0, %v427
    %429 = vmatprep.mubr.bf16.mxu0 0
    %430 = vmatmul.mubr.bf16.gmra.mxu0 %v267
    %v431 = vpop.f32.mrf.mxu0
    %v432 = vadd.f32 0.0, %v431
    %v433 = vpop.f32.mrf.mxu0
    %v434 = vadd.f32 0.0, %v433
    %v435 = vpop.f32.mrf.mxu0
    %v436 = vadd.f32 0.0, %v435
    %v437 = vpop.f32.mrf.mxu0
    %v438 = vadd.f32 0.0, %v437
    %439 = vmatprep.mubr.bf16.mxu0 0
    %440 = vmatmul.mubr.bf16.gmra.mxu0 %v270
    %v441 = vpop.f32.mrf.mxu0
    %v442 = vadd.f32 0.0, %v441
    %v443 = vpop.f32.mrf.mxu0
    %v444 = vadd.f32 0.0, %v443
    %v445 = vpop.f32.mrf.mxu0
    %v446 = vadd.f32 0.0, %v445
    %v447 = vpop.f32.mrf.mxu0
    %v448 = vadd.f32 0.0, %v447
    %449 = vmatprep.mubr.bf16.mxu0 0
    %450 = vmatmul.mubr.bf16.gmra.mxu0 %v273
    %v451 = vpop.f32.mrf.mxu0
    %v452 = vadd.f32 0.0, %v451
    %v453 = vpop.f32.mrf.mxu0
    %v454 = vadd.f32 0.0, %v453
    %v455 = vpop.f32.mrf.mxu0
    %v456 = vpop.f32.mrf.mxu0
    %457 = vdwg.mxu0
    %458 = vmatprep.subr.bf16.mxu0 0
    %459 = vmatpush1.bf16.msra.mxu0 0
    %460 = vmatprep.subr.bf16.mxu0 0
    %461 = vmatpush1.bf16.msra.mxu0 0
    %462 = vmatprep.subr.bf16.mxu0 0
    %463 = vmatpush1.bf16.msra.mxu0 0
    %464 = vmatprep.subr.bf16.mxu0 0
    %465 = vmatpush1.bf16.msra.mxu0 0
    %466 = vmatprep.subr.bf16.mxu0 0
    %467 = vmatpush1.bf16.msra.mxu0 0
    %468 = vmatprep.subr.bf16.mxu0 %v286
    %469 = vmatpush1.bf16.msra.mxu0 %v283
    %470 = vmatprep.subr.bf16.mxu0 %v210
    %471 = vmatpush1.bf16.msra.mxu0 %v209
    %472 = vmatprep.subr.bf16.mxu0 %v203
    %473 = vmatpush1.bf16.msra.mxu0 %v202
    %474 = vmatprep.subr.bf16.mxu0 0
    %475 = vmatpush2.bf16.msra.mxu0 0
    %476 = vmatprep.subr.bf16.mxu0 0
    %477 = vmatpush2.bf16.msra.mxu0 0
    %478 = vmatprep.subr.bf16.mxu0 0
    %479 = vmatpush2.bf16.msra.mxu0 0
    %480 = vmatprep.subr.bf16.mxu0 0
    %481 = vmatpush2.bf16.msra.mxu0 0
    %482 = vmatprep.subr.bf16.mxu0 0
    %483 = vmatpush2.bf16.msra.mxu0 0
    %484 = vmatprep.subr.bf16.mxu0 0
    %485 = vmatpush2.bf16.msra.mxu0 0
    %486 = vmatprep.subr.bf16.mxu0 0
    %487 = vmatpush2.bf16.msra.mxu0 0
    %488 = vmatprep.subr.bf16.mxu0 0
    %489 = vmatpush2.bf16.msra.mxu0 0
    %490 = vmatprep.mubr.bf16.mxu0 0
    %491 = vmatmul.mubr.bf16.gmra.mxu0 %v237
    %v492 = vpop.f32.mrf.mxu0
    %v493 = vadd.f32 0.0, %v492
    %v494 = vpop.f32.mrf.mxu0
    %v495 = vadd.f32 0.0, %v494
    %v496 = vpop.f32.mrf.mxu0
    %v497 = vadd.f32 0.0, %v496
    %v498 = vpop.f32.mrf.mxu0
    %v499 = vadd.f32 0.0, %v498
    %500 = vmatprep.mubr.bf16.mxu0 0
    %501 = vmatmul.mubr.bf16.gmra.mxu0 %v240
    %v502 = vpop.f32.mrf.mxu0
    %v503 = vadd.f32 0.0, %v502
    %v504 = vpop.f32.mrf.mxu0
    %v505 = vadd.f32 0.0, %v504
    %v506 = vpop.f32.mrf.mxu0
    %v507 = vadd.f32 0.0, %v506
    %v508 = vpop.f32.mrf.mxu0
    %v509 = vadd.f32 0.0, %v508
    %510 = vmatprep.mubr.bf16.mxu0 0
    %511 = vmatmul.mubr.bf16.gmra.mxu0 %v243
    %v512 = vpop.f32.mrf.mxu0
    %v513 = vadd.f32 0.0, %v512
    %v514 = vpop.f32.mrf.mxu0
    %v515 = vadd.f32 0.0, %v514
    %v516 = vpop.f32.mrf.mxu0
    %v517 = vadd.f32 0.0, %v516
    %v518 = vpop.f32.mrf.mxu0
    %v519 = vadd.f32 0.0, %v518
    %520 = vmatprep.mubr.bf16.mxu0 0
    %521 = vmatmul.mubr.bf16.gmra.mxu0 %v246
    %v522 = vpop.f32.mrf.mxu0
    %v523 = vadd.f32 0.0, %v522
    %v524 = vpop.f32.mrf.mxu0
    %v525 = vadd.f32 0.0, %v524
    %v526 = vpop.f32.mrf.mxu0
    %v527 = vadd.f32 0.0, %v526
    %v528 = vpop.f32.mrf.mxu0
    %v529 = vadd.f32 0.0, %v528
    %530 = vmatprep.mubr.bf16.mxu0 0
    %531 = vmatmul.mubr.bf16.gmra.mxu0 %v249
    %v532 = vpop.f32.mrf.mxu0
    %v533 = vadd.f32 0.0, %v532
    %v534 = vpop.f32.mrf.mxu0
    %v535 = vadd.f32 0.0, %v534
    %v536 = vpop.f32.mrf.mxu0
    %v537 = vadd.f32 0.0, %v536
    %v538 = vpop.f32.mrf.mxu0
    %v539 = vadd.f32 0.0, %v538
    %540 = vmatprep.mubr.bf16.mxu0 0
    %541 = vmatmul.mubr.bf16.gmra.mxu0 %v252
    %v542 = vpop.f32.mrf.mxu0
    %v543 = vadd.f32 0.0, %v542
    %v544 = vpop.f32.mrf.mxu0
    %v545 = vadd.f32 0.0, %v544
    %v546 = vpop.f32.mrf.mxu0
    %v547 = vadd.f32 0.0, %v546
    %v548 = vpop.f32.mrf.mxu0
    %v549 = vadd.f32 0.0, %v548
    %550 = vmatprep.mubr.bf16.mxu0 0
    %551 = vmatmul.mubr.bf16.gmra.mxu0 %v255
    %v552 = vpop.f32.mrf.mxu0
    %v553 = vadd.f32 0.0, %v552
    %v554 = vpop.f32.mrf.mxu0
    %v555 = vadd.f32 0.0, %v554
    %v556 = vpop.f32.mrf.mxu0
    %v557 = vadd.f32 0.0, %v556
    %v558 = vpop.f32.mrf.mxu0
    %v559 = vadd.f32 0.0, %v558
    %560 = vmatprep.mubr.bf16.mxu0 0
    %561 = vmatmul.mubr.bf16.gmra.mxu0 %v258
    %v562 = vpop.f32.mrf.mxu0
    %v563 = vadd.f32 0.0, %v562
    %v564 = vpop.f32.mrf.mxu0
    %v565 = vadd.f32 0.0, %v564
    %v566 = vpop.f32.mrf.mxu0
    %v567 = vadd.f32 0.0, %v566
    %v568 = vpop.f32.mrf.mxu0
    %v569 = vadd.f32 0.0, %v568
    %570 = vmatprep.mubr.bf16.mxu0 0
    %571 = vmatmul.mubr.bf16.gmra.mxu0 %v261
    %v572 = vpop.f32.mrf.mxu0
    %v573 = vadd.f32 0.0, %v572
    %v574 = vpop.f32.mrf.mxu0
    %v575 = vadd.f32 0.0, %v574
    %v576 = vpop.f32.mrf.mxu0
    %v577 = vadd.f32 0.0, %v576
    %v578 = vpop.f32.mrf.mxu0
    %v579 = vadd.f32 0.0, %v578
    %580 = vmatprep.mubr.bf16.mxu0 0
    %581 = vmatmul.mubr.bf16.gmra.mxu0 %v264
    %v582 = vpop.f32.mrf.mxu0
    %v583 = vadd.f32 0.0, %v582
    %v584 = vpop.f32.mrf.mxu0
    %v585 = vadd.f32 0.0, %v584
    %v586 = vpop.f32.mrf.mxu0
    %v587 = vadd.f32 0.0, %v586
    %v588 = vpop.f32.mrf.mxu0
    %v589 = vadd.f32 0.0, %v588
    %590 = vmatprep.mubr.bf16.mxu0 0
    %591 = vmatmul.mubr.bf16.gmra.mxu0 %v267
    %v592 = vpop.f32.mrf.mxu0
    %v593 = vadd.f32 0.0, %v592
    %v594 = vpop.f32.mrf.mxu0
    %v595 = vadd.f32 0.0, %v594
    %v596 = vpop.f32.mrf.mxu0
    %v597 = vadd.f32 0.0, %v596
    %v598 = vpop.f32.mrf.mxu0
    %v599 = vadd.f32 0.0, %v598
    %600 = vmatprep.mubr.bf16.mxu0 0
    %601 = vmatmul.mubr.bf16.gmra.mxu0 %v270
    %v602 = vpop.f32.mrf.mxu0
    %v603 = vadd.f32 0.0, %v602
    %v604 = vpop.f32.mrf.mxu0
    %v605 = vadd.f32 0.0, %v604
    %v606 = vpop.f32.mrf.mxu0
    %v607 = vadd.f32 0.0, %v606
    %v608 = vpop.f32.mrf.mxu0
    %v609 = vadd.f32 0.0, %v608
    %610 = vmatprep.mubr.bf16.mxu0 0
    %611 = vmatmul.mubr.bf16.gmra.mxu0 %v273
    %v612 = vpop.f32.mrf.mxu0
    %v613 = vadd.f32 0.0, %v612
    %v614 = vpop.f32.mrf.mxu0
    %v615 = vadd.f32 0.0, %v614
    %v616 = vpop.f32.mrf.mxu0
    %v617 = vpop.f32.mrf.mxu0
    %618 = vdwg.mxu0
    %619 = vmatprep.subr.bf16.mxu0 0
    %620 = vmatpush1.bf16.msra.mxu0 0
    %621 = vmatprep.subr.bf16.mxu0 0
    %622 = vmatpush1.bf16.msra.mxu0 0
    %623 = vmatprep.subr.bf16.mxu0 0
    %624 = vmatpush1.bf16.msra.mxu0 0
    %625 = vmatprep.subr.bf16.mxu0 0
    %626 = vmatpush1.bf16.msra.mxu0 0
    %627 = vmatprep.subr.bf16.mxu0 0
    %628 = vmatpush1.bf16.msra.mxu0 0
    %629 = vmatprep.subr.bf16.mxu0 %v292
    %630 = vmatpush1.bf16.msra.mxu0 %v289
    %631 = vmatprep.subr.bf16.mxu0 %v212
    %632 = vmatpush1.bf16.msra.mxu0 %v211
    %633 = vmatprep.subr.bf16.mxu0 %v205
    %634 = vmatpush1.bf16.msra.mxu0 %v204
    %635 = vmatprep.subr.bf16.mxu0 0
    %636 = vmatpush2.bf16.msra.mxu0 0
    %637 = vmatprep.subr.bf16.mxu0 0
    %638 = vmatpush2.bf16.msra.mxu0 0
    %639 = vmatprep.subr.bf16.mxu0 0
    %640 = vmatpush2.bf16.msra.mxu0 0
    %641 = vmatprep.subr.bf16.mxu0 0
    %642 = vmatpush2.bf16.msra.mxu0 0
    %643 = vmatprep.subr.bf16.mxu0 0
    %644 = vmatpush2.bf16.msra.mxu0 0
    %645 = vmatprep.subr.bf16.mxu0 0
    %646 = vmatpush2.bf16.msra.mxu0 0
    %647 = vmatprep.subr.bf16.mxu0 0
    %648 = vmatpush2.bf16.msra.mxu0 0
    %649 = vmatprep.subr.bf16.mxu0 0
    %650 = vmatpush2.bf16.msra.mxu0 0
    %651 = vmatprep.mubr.bf16.mxu0 0
    %652 = vmatmul.mubr.bf16.gmra.mxu0 %v237
    %v653 = vpop.f32.mrf.mxu0
    %v654 = vadd.f32 0.0, %v653
    %v655 = vpop.f32.mrf.mxu0
    %v656 = vadd.f32 0.0, %v655
    %v657 = vpop.f32.mrf.mxu0
    %v658 = vadd.f32 0.0, %v657
    %v659 = vpop.f32.mrf.mxu0
    %v660 = vadd.f32 0.0, %v659
    %661 = vmatprep.mubr.bf16.mxu0 0
    %662 = vmatmul.mubr.bf16.gmra.mxu0 %v240
    %v663 = vpop.f32.mrf.mxu0
    %v664 = vadd.f32 0.0, %v663
    %v665 = vpop.f32.mrf.mxu0
    %v666 = vadd.f32 0.0, %v665
    %v667 = vpop.f32.mrf.mxu0
    %v668 = vadd.f32 0.0, %v667
    %v669 = vpop.f32.mrf.mxu0
    %v670 = vadd.f32 0.0, %v669
    %671 = vmatprep.mubr.bf16.mxu0 0
    %672 = vmatmul.mubr.bf16.gmra.mxu0 %v243
    %v673 = vpop.f32.mrf.mxu0
    %v674 = vadd.f32 0.0, %v673
    %v675 = vpop.f32.mrf.mxu0
    %v676 = vadd.f32 0.0, %v675
    %v677 = vpop.f32.mrf.mxu0
    %v678 = vadd.f32 0.0, %v677
    %v679 = vpop.f32.mrf.mxu0
    %v680 = vadd.f32 0.0, %v679
    %681 = vmatprep.mubr.bf16.mxu0 0
    %682 = vmatmul.mubr.bf16.gmra.mxu0 %v246
    %v683 = vpop.f32.mrf.mxu0
    %v684 = vadd.f32 0.0, %v683
    %v685 = vpop.f32.mrf.mxu0
    %v686 = vadd.f32 0.0, %v685
    %v687 = vpop.f32.mrf.mxu0
    %v688 = vadd.f32 0.0, %v687
    %v689 = vpop.f32.mrf.mxu0
    %v690 = vadd.f32 0.0, %v689
    %691 = vmatprep.mubr.bf16.mxu0 0
    %692 = vmatmul.mubr.bf16.gmra.mxu0 %v249
    %v693 = vpop.f32.mrf.mxu0
    %v694 = vadd.f32 0.0, %v693
    %v695 = vpop.f32.mrf.mxu0
    %v696 = vadd.f32 0.0, %v695
    %v697 = vpop.f32.mrf.mxu0
    %v698 = vadd.f32 0.0, %v697
    %v699 = vpop.f32.mrf.mxu0
    %v700 = vadd.f32 0.0, %v699
    %701 = vmatprep.mubr.bf16.mxu0 0
    %702 = vmatmul.mubr.bf16.gmra.mxu0 %v252
    %v703 = vpop.f32.mrf.mxu0
    %v704 = vadd.f32 0.0, %v703
    %v705 = vpop.f32.mrf.mxu0
    %v706 = vadd.f32 0.0, %v705
    %v707 = vpop.f32.mrf.mxu0
    %v708 = vadd.f32 0.0, %v707
    %v709 = vpop.f32.mrf.mxu0
    %v710 = vadd.f32 0.0, %v709
    %711 = vmatprep.mubr.bf16.mxu0 0
    %712 = vmatmul.mubr.bf16.gmra.mxu0 %v255
    %v713 = vpop.f32.mrf.mxu0
    %v714 = vadd.f32 0.0, %v713
    %v715 = vpop.f32.mrf.mxu0
    %v716 = vadd.f32 0.0, %v715
    %v717 = vpop.f32.mrf.mxu0
    %v718 = vadd.f32 0.0, %v717
    %v719 = vpop.f32.mrf.mxu0
    %v720 = vadd.f32 0.0, %v719
    %721 = vmatprep.mubr.bf16.mxu0 0
    %722 = vmatmul.mubr.bf16.gmra.mxu0 %v258
    %v723 = vpop.f32.mrf.mxu0
    %v724 = vadd.f32 0.0, %v723
    %v725 = vpop.f32.mrf.mxu0
    %v726 = vadd.f32 0.0, %v725
    %v727 = vpop.f32.mrf.mxu0
    %v728 = vadd.f32 0.0, %v727
    %v729 = vpop.f32.mrf.mxu0
    %v730 = vadd.f32 0.0, %v729
    %731 = vmatprep.mubr.bf16.mxu0 0
    %732 = vmatmul.mubr.bf16.gmra.mxu0 %v261
    %v733 = vpop.f32.mrf.mxu0
    %v734 = vadd.f32 0.0, %v733
    %v735 = vpop.f32.mrf.mxu0
    %v736 = vadd.f32 0.0, %v735
    %v737 = vpop.f32.mrf.mxu0
    %v738 = vadd.f32 0.0, %v737
    %v739 = vpop.f32.mrf.mxu0
    %v740 = vadd.f32 0.0, %v739
    %741 = vmatprep.mubr.bf16.mxu0 0
    %742 = vmatmul.mubr.bf16.gmra.mxu0 %v264
    %v743 = vpop.f32.mrf.mxu0
    %v744 = vadd.f32 0.0, %v743
    %v745 = vpop.f32.mrf.mxu0
    %v746 = vadd.f32 0.0, %v745
    %v747 = vpop.f32.mrf.mxu0
    %v748 = vadd.f32 0.0, %v747
    %v749 = vpop.f32.mrf.mxu0
    %v750 = vadd.f32 0.0, %v749
    %751 = vmatprep.mubr.bf16.mxu0 0
    %752 = vmatmul.mubr.bf16.gmra.mxu0 %v267
    %v753 = vpop.f32.mrf.mxu0
    %v754 = vadd.f32 0.0, %v753
    %v755 = vpop.f32.mrf.mxu0
    %v756 = vadd.f32 0.0, %v755
    %v757 = vpop.f32.mrf.mxu0
    %v758 = vadd.f32 0.0, %v757
    %v759 = vpop.f32.mrf.mxu0
    %v760 = vadd.f32 0.0, %v759
    %761 = vmatprep.mubr.bf16.mxu0 0
    %762 = vmatmul.mubr.bf16.gmra.mxu0 %v270
    %v763 = vpop.f32.mrf.mxu0
    %v764 = vadd.f32 0.0, %v763
    %v765 = vpop.f32.mrf.mxu0
    %v766 = vadd.f32 0.0, %v765
    %v767 = vpop.f32.mrf.mxu0
    %v768 = vadd.f32 0.0, %v767
    %v769 = vpop.f32.mrf.mxu0
    %v770 = vadd.f32 0.0, %v769
    %771 = vmatprep.mubr.bf16.mxu0 0
    %772 = vmatmul.mubr.bf16.gmra.mxu0 %v273
    %v773 = vpop.f32.mrf.mxu0
    %v774 = vadd.f32 0.0, %v773
    %v775 = vpop.f32.mrf.mxu0
    %v776 = vadd.f32 0.0, %v775
    %v777 = vpop.f32.mrf.mxu0
    %v778 = vpop.f32.mrf.mxu0
    %779 = vdwg.mxu0
    %780 = vmatprep.subr.bf16.mxu0 0
    %781 = vmatpush1.bf16.msra.mxu0 0
    %782 = vmatprep.subr.bf16.mxu0 0
    %783 = vmatpush1.bf16.msra.mxu0 0
    %784 = vmatprep.subr.bf16.mxu0 0
    %785 = vmatpush1.bf16.msra.mxu0 0
    %786 = vmatprep.subr.bf16.mxu0 0
    %787 = vmatpush1.bf16.msra.mxu0 0
    %788 = vmatprep.subr.bf16.mxu0 0
    %789 = vmatpush1.bf16.msra.mxu0 0
    %790 = vmatprep.subr.bf16.mxu0 0
    %791 = vmatpush1.bf16.msra.mxu0 %v295
    %792 = vmatprep.subr.bf16.mxu0 0
    %793 = vmatpush1.bf16.msra.mxu0 %v213
    %794 = vmatprep.subr.bf16.mxu0 0
    %795 = vmatpush1.bf16.msra.mxu0 %v206
    %796 = vmatprep.subr.bf16.mxu0 0
    %797 = vmatpush2.bf16.msra.mxu0 0
    %798 = vmatprep.subr.bf16.mxu0 0
    %799 = vmatpush2.bf16.msra.mxu0 0
    %800 = vmatprep.subr.bf16.mxu0 0
    %801 = vmatpush2.bf16.msra.mxu0 0
    %802 = vmatprep.subr.bf16.mxu0 0
    %803 = vmatpush2.bf16.msra.mxu0 0
    %804 = vmatprep.subr.bf16.mxu0 0
    %805 = vmatpush2.bf16.msra.mxu0 0
    %806 = vmatprep.subr.bf16.mxu0 0
    %807 = vmatpush2.bf16.msra.mxu0 0
    %808 = vmatprep.subr.bf16.mxu0 0
    %809 = vmatpush2.bf16.msra.mxu0 0
    %810 = vmatprep.subr.bf16.mxu0 0
    %811 = vmatpush2.bf16.msra.mxu0 0
    %812 = vmatprep.mubr.bf16.mxu0 0
    %813 = vmatmul.mubr.bf16.gmra.mxu0 %v237
    %v814 = vpop.f32.mrf.mxu0
    %v815 = vadd.f32 0.0, %v814
    %v816 = vpop.f32.mrf.mxu0
    %v817 = vpop.f32.mrf.mxu0
    %v818 = vadd.f32 0.0, %v817
    %v819 = vpop.f32.mrf.mxu0
    %820 = vmatprep.mubr.bf16.mxu0 0
    %821 = vmatmul.mubr.bf16.gmra.mxu0 %v240
    %v822 = vpop.f32.mrf.mxu0
    %v823 = vadd.f32 0.0, %v822
    %v824 = vpop.f32.mrf.mxu0
    %v825 = vpop.f32.mrf.mxu0
    %v826 = vadd.f32 0.0, %v825
    %v827 = vpop.f32.mrf.mxu0
    %828 = vmatprep.mubr.bf16.mxu0 0
    %829 = vmatmul.mubr.bf16.gmra.mxu0 %v243
    %v830 = vpop.f32.mrf.mxu0
    %v831 = vadd.f32 0.0, %v830
    %v832 = vpop.f32.mrf.mxu0
    %v833 = vpop.f32.mrf.mxu0
    %v834 = vadd.f32 0.0, %v833
    %v835 = vpop.f32.mrf.mxu0
    %836 = vmatprep.mubr.bf16.mxu0 0
    %837 = vmatmul.mubr.bf16.gmra.mxu0 %v246
    %v838 = vpop.f32.mrf.mxu0
    %v839 = vadd.f32 0.0, %v838
    %v840 = vpop.f32.mrf.mxu0
    %v841 = vpop.f32.mrf.mxu0
    %v842 = vadd.f32 0.0, %v841
    %v843 = vpop.f32.mrf.mxu0
    %844 = vmatprep.mubr.bf16.mxu0 0
    %845 = vmatmul.mubr.bf16.gmra.mxu0 %v249
    %v846 = vpop.f32.mrf.mxu0
    %v847 = vadd.f32 0.0, %v846
    %v848 = vpop.f32.mrf.mxu0
    %v849 = vpop.f32.mrf.mxu0
    %v850 = vadd.f32 0.0, %v849
    %v851 = vpop.f32.mrf.mxu0
    %852 = vmatprep.mubr.bf16.mxu0 0
    %853 = vmatmul.mubr.bf16.gmra.mxu0 %v252
    %v854 = vpop.f32.mrf.mxu0
    %v855 = vadd.f32 0.0, %v854
    %v856 = vpop.f32.mrf.mxu0
    %v857 = vpop.f32.mrf.mxu0
    %v858 = vadd.f32 0.0, %v857
    %v859 = vpop.f32.mrf.mxu0
    %860 = vmatprep.mubr.bf16.mxu0 0
    %861 = vmatmul.mubr.bf16.gmra.mxu0 %v255
    %v862 = vpop.f32.mrf.mxu0
    %v863 = vadd.f32 0.0, %v862
    %v864 = vpop.f32.mrf.mxu0
    %v865 = vpop.f32.mrf.mxu0
    %v866 = vadd.f32 0.0, %v865
    %v867 = vpop.f32.mrf.mxu0
    %868 = vmatprep.mubr.bf16.mxu0 0
    %869 = vmatmul.mubr.bf16.gmra.mxu0 %v258
    %v870 = vpop.f32.mrf.mxu0
    %v871 = vadd.f32 0.0, %v870
    %v872 = vpop.f32.mrf.mxu0
    %v873 = vpop.f32.mrf.mxu0
    %v874 = vadd.f32 0.0, %v873
    %v875 = vpop.f32.mrf.mxu0
    %876 = vmatprep.mubr.bf16.mxu0 0
    %877 = vmatmul.mubr.bf16.gmra.mxu0 %v261
    %v878 = vpop.f32.mrf.mxu0
    %v879 = vadd.f32 0.0, %v878
    %v880 = vpop.f32.mrf.mxu0
    %v881 = vpop.f32.mrf.mxu0
    %v882 = vadd.f32 0.0, %v881
    %v883 = vpop.f32.mrf.mxu0
    %884 = vmatprep.mubr.bf16.mxu0 0
    %885 = vmatmul.mubr.bf16.gmra.mxu0 %v264
    %v886 = vpop.f32.mrf.mxu0
    %v887 = vadd.f32 0.0, %v886
    %v888 = vpop.f32.mrf.mxu0
    %v889 = vpop.f32.mrf.mxu0
    %v890 = vadd.f32 0.0, %v889
    %v891 = vpop.f32.mrf.mxu0
    %892 = vmatprep.mubr.bf16.mxu0 0
    %893 = vmatmul.mubr.bf16.gmra.mxu0 %v267
    %v894 = vpop.f32.mrf.mxu0
    %v895 = vadd.f32 0.0, %v894
    %v896 = vpop.f32.mrf.mxu0
    %v897 = vpop.f32.mrf.mxu0
    %v898 = vadd.f32 0.0, %v897
    %v899 = vpop.f32.mrf.mxu0
    %900 = vmatprep.mubr.bf16.mxu0 0
    %901 = vmatmul.mubr.bf16.gmra.mxu0 %v270
    %v902 = vpop.f32.mrf.mxu0
    %v903 = vadd.f32 0.0, %v902
    %v904 = vpop.f32.mrf.mxu0
    %v905 = vpop.f32.mrf.mxu0
    %v906 = vadd.f32 0.0, %v905
    %v907 = vpop.f32.mrf.mxu0
    %908 = vmatprep.mubr.bf16.mxu0 0
    %909 = vmatmul.mubr.bf16.gmra.mxu0 %v273
    %v910 = vpop.f32.mrf.mxu0
    %v911 = vadd.f32 0.0, %v910
    %v912 = vpop.f32.mrf.mxu0
    %v913 = vpop.f32.mrf.mxu0
    %v914 = vpop.f32.mrf.mxu0
    %915 = vdwg.mxu0
    %v916 = vmax.f32 %v332, 0.0
    %v917 = vmax.f32 %v334, 0.0
    %v918 = vmax.f32 %v493, 0.0
    %v919 = vmax.f32 %v495, 0.0
    %v920 = vmax.f32 %v336, 0.0
    %v921 = vmax.f32 %v338, 0.0
    %v922 = vmax.f32 %v497, 0.0
    %v923 = vmax.f32 %v499, 0.0
    %v924 = vmax.f32 %v342, 0.0
    %v925 = vmax.f32 %v344, 0.0
    %v926 = vmax.f32 %v503, 0.0
    %v927 = vmax.f32 %v505, 0.0
    %v928 = vmax.f32 %v346, 0.0
    %v929 = vmax.f32 %v348, 0.0
    %v930 = vmax.f32 %v507, 0.0
    %v931 = vmax.f32 %v509, 0.0
    %v932 = vmax.f32 %v352, 0.0
    %v933 = vmax.f32 %v354, 0.0
    %v934 = vmax.f32 %v513, 0.0
    %v935 = vmax.f32 %v515, 0.0
    %v936 = vmax.f32 %v356, 0.0
    %v937 = vmax.f32 %v358, 0.0
    %v938 = vmax.f32 %v517, 0.0
    %v939 = vmax.f32 %v519, 0.0
    %v940 = vmax.f32 %v362, 0.0
    %v941 = vmax.f32 %v364, 0.0
    %v942 = vmax.f32 %v523, 0.0
    %v943 = vmax.f32 %v525, 0.0
    %v944 = vmax.f32 %v366, 0.0
    %v945 = vmax.f32 %v368, 0.0
    %v946 = vmax.f32 %v527, 0.0
    %v947 = vmax.f32 %v529, 0.0
    %v948 = vmax.f32 %v372, 0.0
    %v949 = vmax.f32 %v374, 0.0
    %v950 = vmax.f32 %v533, 0.0
    %v951 = vmax.f32 %v535, 0.0
    %v952 = vmax.f32 %v376, 0.0
    %v953 = vmax.f32 %v378, 0.0
    %v954 = vmax.f32 %v537, 0.0
    %v955 = vmax.f32 %v539, 0.0
    %v956 = vmax.f32 %v382, 0.0
    %v957 = vmax.f32 %v384, 0.0
    %v958 = vmax.f32 %v543, 0.0
    %v959 = vmax.f32 %v545, 0.0
    %v960 = vmax.f32 %v386, 0.0
    %v961 = vmax.f32 %v388, 0.0
    %v962 = vmax.f32 %v547, 0.0
    %v963 = vmax.f32 %v549, 0.0
    %v964 = vmax.f32 %v392, 0.0
    %v965 = vmax.f32 %v394, 0.0
    %v966 = vmax.f32 %v553, 0.0
    %v967 = vmax.f32 %v555, 0.0
    %v968 = vmax.f32 %v396, 0.0
    %v969 = vmax.f32 %v398, 0.0
    %v970 = vmax.f32 %v557, 0.0
    %v971 = vmax.f32 %v559, 0.0
    %v972 = vmax.f32 %v402, 0.0
    %v973 = vmax.f32 %v404, 0.0
    %v974 = vmax.f32 %v563, 0.0
    %v975 = vmax.f32 %v565, 0.0
    %v976 = vmax.f32 %v406, 0.0
    %v977 = vmax.f32 %v408, 0.0
    %v978 = vmax.f32 %v567, 0.0
    %v979 = vmax.f32 %v569, 0.0
    %v980 = vmax.f32 %v412, 0.0
    %v981 = vmax.f32 %v414, 0.0
    %v982 = vmax.f32 %v573, 0.0
    %v983 = vmax.f32 %v575, 0.0
    %v984 = vmax.f32 %v416, 0.0
    %v985 = vmax.f32 %v418, 0.0
    %v986 = vmax.f32 %v577, 0.0
    %v987 = vmax.f32 %v579, 0.0
    %v988 = vmax.f32 %v422, 0.0
    %v989 = vmax.f32 %v424, 0.0
    %v990 = vmax.f32 %v583, 0.0
    %v991 = vmax.f32 %v585, 0.0
    %v992 = vmax.f32 %v426, 0.0
    %v993 = vmax.f32 %v428, 0.0
    %v994 = vmax.f32 %v587, 0.0
    %v995 = vmax.f32 %v589, 0.0
    %v996 = vmax.f32 %v432, 0.0
    %v997 = vmax.f32 %v434, 0.0
    %v998 = vmax.f32 %v593, 0.0
    %v999 = vmax.f32 %v595, 0.0
    %v1000 = vmax.f32 %v436, 0.0
    %v1001 = vmax.f32 %v438, 0.0
    %v1002 = vmax.f32 %v597, 0.0
    %v1003 = vmax.f32 %v599, 0.0
    %v1004 = vmax.f32 %v442, 0.0
    %v1005 = vmax.f32 %v444, 0.0
    %v1006 = vmax.f32 %v603, 0.0
    %v1007 = vmax.f32 %v605, 0.0
    %v1008 = vmax.f32 %v446, 0.0
    %v1009 = vmax.f32 %v448, 0.0
    %v1010 = vmax.f32 %v607, 0.0
    %v1011 = vmax.f32 %v609, 0.0
    %v1012 = vmax.f32 %v452, 0.0
    %v1013 = vmax.f32 %v454, 0.0
    %v1014 = vmax.f32 %v613, 0.0
    %v1015 = vmax.f32 %v615, 0.0
    %v1016 = vpack.c.bf16 %v920, %v916
    %v1017 = vpack.c.bf16 %v921, %v917
    %v1018 = vpack.c.bf16 %v922, %v918
    %v1019 = vpack.c.bf16 %v923, %v919
    %v1020 = vpack.c.bf16 %v928, %v924
    %v1021 = vpack.c.bf16 %v929, %v925
    %v1022 = vpack.c.bf16 %v930, %v926
    %v1023 = vpack.c.bf16 %v931, %v927
    %v1024 = vpack.c.bf16 %v936, %v932
    %v1025 = vpack.c.bf16 %v937, %v933
    %v1026 = vpack.c.bf16 %v938, %v934
    %v1027 = vpack.c.bf16 %v939, %v935
    %v1028 = vpack.c.bf16 %v944, %v940
    %v1029 = vpack.c.bf16 %v945, %v941
    %v1030 = vpack.c.bf16 %v946, %v942
    %v1031 = vpack.c.bf16 %v947, %v943
    %v1032 = vpack.c.bf16 %v952, %v948
    %v1033 = vpack.c.bf16 %v953, %v949
    %v1034 = vpack.c.bf16 %v954, %v950
    %v1035 = vpack.c.bf16 %v955, %v951
    %v1036 = vpack.c.bf16 %v960, %v956
    %v1037 = vpack.c.bf16 %v961, %v957
    %v1038 = vpack.c.bf16 %v962, %v958
    %v1039 = vpack.c.bf16 %v963, %v959
    %v1040 = vpack.c.bf16 %v968, %v964
    %v1041 = vpack.c.bf16 %v969, %v965
    %v1042 = vpack.c.bf16 %v970, %v966
    %v1043 = vpack.c.bf16 %v971, %v967
    %v1044 = vpack.c.bf16 %v976, %v972
    %v1045 = vpack.c.bf16 %v977, %v973
    %v1046 = vpack.c.bf16 %v978, %v974
    %v1047 = vpack.c.bf16 %v979, %v975
    %v1048 = vpack.c.bf16 %v984, %v980
    %v1049 = vpack.c.bf16 %v985, %v981
    %v1050 = vpack.c.bf16 %v986, %v982
    %v1051 = vpack.c.bf16 %v987, %v983
    %v1052 = vpack.c.bf16 %v992, %v988
    %v1053 = vpack.c.bf16 %v993, %v989
    %v1054 = vpack.c.bf16 %v994, %v990
    %v1055 = vpack.c.bf16 %v995, %v991
    %v1056 = vpack.c.bf16 %v1000, %v996
    %v1057 = vpack.c.bf16 %v1001, %v997
    %v1058 = vpack.c.bf16 %v1002, %v998
    %v1059 = vpack.c.bf16 %v1003, %v999
    %v1060 = vpack.c.bf16 %v1008, %v1004
    %v1061 = vpack.c.bf16 %v1009, %v1005
    %v1062 = vpack.c.bf16 %v1010, %v1006
    %v1063 = vpack.c.bf16 %v1011, %v1007
    %v1064 = vpack.c.bf16 %v1012, %v1012
    %v1065 = vpack.c.bf16 %v1013, %v1013
    %v1066 = vpack.c.bf16 %v1014, %v1014
    %v1067 = vpack.c.bf16 %v1015, %v1015
    %v1068 = vld [vmem:[#allocation3] sm:$0xff]
    %v1069 = vld [vmem:[#allocation3 + $0x8] sm:$0xf]
    %v1070 = vld [vmem:[#allocation3 + $0xc] sm:$0xff]
    %v1071 = vld [vmem:[#allocation3 + $0x14] sm:$0xf]
    %v1072 = vld [vmem:[#allocation3 + $0x18] sm:$0xff]
    %v1073 = vld [vmem:[#allocation3 + $0x20] sm:$0xf]
    %v1074 = vld [vmem:[#allocation3 + $0x24] sm:$0xff]
    %v1075 = vld [vmem:[#allocation3 + $0x2c] sm:$0xf]
    %v1076 = vld [vmem:[#allocation3 + $0x30] sm:$0xff]
    %v1077 = vld [vmem:[#allocation3 + $0x38] sm:$0xf]
    %v1078 = vld [vmem:[#allocation3 + $0x3c] sm:$0xff]
    %v1079 = vld [vmem:[#allocation3 + $0x44] sm:$0xf]
    %v1080 = vld [vmem:[#allocation3 + $0x48] sm:$0xff]
    %v1081 = vld [vmem:[#allocation3 + $0x50] sm:$0xf]
    %v1082 = vld [vmem:[#allocation3 + $0x54] sm:$0xff]
    %v1083 = vld [vmem:[#allocation3 + $0x5c] sm:$0xf]
    %v1084 = vld [vmem:[#allocation3 + $0x60] sm:$0xff]
    %v1085 = vld [vmem:[#allocation3 + $0x68] sm:$0xf]
    %v1086 = vld [vmem:[#allocation3 + $0x6c] sm:$0xff]
    %v1087 = vld [vmem:[#allocation3 + $0x74] sm:$0xf]
    %v1088 = vld [vmem:[#allocation3 + $0x78] sm:$0xff]
    %v1089 = vld [vmem:[#allocation3 + $0x80] sm:$0xf]
    %v1090 = vld [vmem:[#allocation3 + $0x84] sm:$0xff]
    %v1091 = vld [vmem:[#allocation3 + $0x8c] sm:$0xf]
    %v1092 = vld [vmem:[#allocation3 + $0x90] sm:$0xff]
    %v1093 = vld [vmem:[#allocation3 + $0x98] sm:$0xf]
    %v1094 = vld [vmem:[#allocation3 + $0x9c] sm:$0xff]
    %v1095 = vld [vmem:[#allocation3 + $0xa4] sm:$0xf]
    %v1096 = vld [vmem:[#allocation3 + $0xa8] sm:$0xff]
    %v1097 = vld [vmem:[#allocation3 + $0xb0] sm:$0xf]
    %v1098 = vld [vmem:[#allocation3 + $0xb4] sm:$0xff]
    %v1099 = vld [vmem:[#allocation3 + $0xbc] sm:$0xf]
    %v1100 = vld [vmem:[#allocation3 + $0xc0] sm:$0xff]
    %v1101 = vld [vmem:[#allocation3 + $0xc8] sm:$0xf]
    %v1102 = vld [vmem:[#allocation3 + $0xcc] sm:$0xff]
    %v1103 = vld [vmem:[#allocation3 + $0xd4] sm:$0xf]
    %v1104 = vld [vmem:[#allocation3 + $0xd8] sm:$0xff]
    %v1105 = vld [vmem:[#allocation3 + $0xe0] sm:$0xf]
    %v1106 = vld [vmem:[#allocation3 + $0xe4] sm:$0xff]
    %v1107 = vld [vmem:[#allocation3 + $0xec] sm:$0xf]
    %v1108 = vld [vmem:[#allocation3 + $0xf0] sm:$0xff]
    %v1109 = vld [vmem:[#allocation3 + $0xf8] sm:$0xf]
    %v1110 = vld [vmem:[#allocation3 + $0xfc] sm:$0xff]
    %v1111 = vld [vmem:[#allocation3 + $0x104] sm:$0xf]
    %v1112 = vld [vmem:[#allocation3 + $0x108] sm:$0xff]
    %v1113 = vld [vmem:[#allocation3 + $0x110] sm:$0xf]
    %v1114 = vld [vmem:[#allocation3 + $0x114] sm:$0xff]
    %v1115 = vld [vmem:[#allocation3 + $0x11c] sm:$0xf]
    %v1116 = vld [vmem:[#allocation3 + $0x120] sm:$0xff]
    %v1117 = vld [vmem:[#allocation3 + $0x128] sm:$0xf]
    %v1118 = vld [vmem:[#allocation3 + $0x12c] sm:$0xff]
    %v1119 = vld [vmem:[#allocation3 + $0x134] sm:$0xf]
    %v1120 = vld [vmem:[#allocation3 + $0x138] sm:$0xff]
    %v1121 = vld [vmem:[#allocation3 + $0x140] sm:$0xf]
    %v1122 = vld [vmem:[#allocation3 + $0x144] sm:$0xff]
    %v1123 = vld [vmem:[#allocation3 + $0x14c] sm:$0xf]
    %v1124 = vld [vmem:[#allocation3 + $0x150] sm:$0xff]
    %v1125 = vld [vmem:[#allocation3 + $0x158] sm:$0xf]
    %v1126 = vld [vmem:[#allocation3 + $0x15c] sm:$0xff]
    %v1127 = vld [vmem:[#allocation3 + $0x164] sm:$0xf]
    %v1128 = vld [vmem:[#allocation3 + $0x168] sm:$0xff]
    %v1129 = vld [vmem:[#allocation3 + $0x170] sm:$0xf]
    %v1130 = vld [vmem:[#allocation3 + $0x174] sm:$0xff]
    %v1131 = vld [vmem:[#allocation3 + $0x17c] sm:$0xf]
    %v1132 = vld [vmem:[#allocation3 + $0x180] sm:$0xff]
    %v1133 = vld [vmem:[#allocation3 + $0x188] sm:$0xf]
    %v1134 = vld [vmem:[#allocation3 + $0x18c] sm:$0xff]
    %v1135 = vld [vmem:[#allocation3 + $0x194] sm:$0xf]
    %v1136 = vld [vmem:[#allocation3 + $0x198] sm:$0xff]
    %v1137 = vld [vmem:[#allocation3 + $0x1a0] sm:$0xf]
    %v1138 = vld [vmem:[#allocation3 + $0x1a4] sm:$0xff]
    %v1139 = vld [vmem:[#allocation3 + $0x1ac] sm:$0xf]
    %v1140 = vld [vmem:[#allocation3 + $0x1b0] sm:$0xff]
    %v1141 = vld [vmem:[#allocation3 + $0x1b8] sm:$0xf]
    %v1142 = vld [vmem:[#allocation3 + $0x1bc] sm:$0xff]
    %v1143 = vld [vmem:[#allocation3 + $0x1c4] sm:$0xf]
    %v1144 = vld [vmem:[#allocation3 + $0x1c8] sm:$0xff]
    %v1145 = vld [vmem:[#allocation3 + $0x1d0] sm:$0xf]
    %v1146 = vld [vmem:[#allocation3 + $0x1d4] sm:$0xff]
    %v1147 = vld [vmem:[#allocation3 + $0x1dc] sm:$0xf]
    %v1148 = vld [vmem:[#allocation3 + $0x1e0] sm:$0xff]
    %v1149 = vld [vmem:[#allocation3 + $0x1e8] sm:$0xf]
    %v1150 = vld [vmem:[#allocation3 + $0x1ec] sm:$0xff]
    %v1151 = vld [vmem:[#allocation3 + $0x1f4] sm:$0xf]
    %v1152 = vld [vmem:[#allocation3 + $0x1f8] sm:$0xff]
    %v1153 = vld [vmem:[#allocation3 + $0x200] sm:$0xf]
    %v1154 = vld [vmem:[#allocation3 + $0x204] sm:$0xff]
    %v1155 = vld [vmem:[#allocation3 + $0x20c] sm:$0xf]
    %v1156 = vld [vmem:[#allocation3 + $0x210] sm:$0xff]
    %v1157 = vld [vmem:[#allocation3 + $0x218] sm:$0xf]
    %v1158 = vld [vmem:[#allocation3 + $0x21c] sm:$0xff]
    %v1159 = vld [vmem:[#allocation3 + $0x224] sm:$0xf]
    %v1160 = vld [vmem:[#allocation3 + $0x228] sm:$0xff]
    %v1161 = vld [vmem:[#allocation3 + $0x230] sm:$0xf]
    %v1162 = vld [vmem:[#allocation3 + $0x234] sm:$0xff]
    %v1163 = vld [vmem:[#allocation3 + $0x23c] sm:$0xf]
    %v1164 = vld [vmem:[#allocation3 + $0x240] sm:$0xff]
    %v1165 = vld [vmem:[#allocation3 + $0x248] sm:$0xf]
    %v1166 = vld [vmem:[#allocation3 + $0x24c] sm:$0xff]
    %v1167 = vld [vmem:[#allocation3 + $0x254] sm:$0xf]
    %v1168 = vld [vmem:[#allocation3 + $0x258] sm:$0xff]
    %v1169 = vld [vmem:[#allocation3 + $0x260] sm:$0xf]
    %v1170 = vld [vmem:[#allocation3 + $0x264] sm:$0xff]
    %v1171 = vld [vmem:[#allocation3 + $0x26c] sm:$0xf]
    %v1172 = vld [vmem:[#allocation3 + $0x270] sm:$0xff]
    %v1173 = vld [vmem:[#allocation3 + $0x278] sm:$0xf]
    %v1174 = vld [vmem:[#allocation3 + $0x27c] sm:$0xff]
    %v1175 = vld [vmem:[#allocation3 + $0x284] sm:$0xf]
    %v1176 = vld [vmem:[#allocation3 + $0x288] sm:$0xff]
    %v1177 = vld [vmem:[#allocation3 + $0x290] sm:$0xf]
    %v1178 = vld [vmem:[#allocation3 + $0x294] sm:$0xff]
    %v1179 = vld [vmem:[#allocation3 + $0x29c] sm:$0xf]
    %v1180 = vld [vmem:[#allocation3 + $0x2a0] sm:$0xff]
    %v1181 = vld [vmem:[#allocation3 + $0x2a8] sm:$0xf]
    %v1182 = vld [vmem:[#allocation3 + $0x2ac] sm:$0xff]
    %v1183 = vld [vmem:[#allocation3 + $0x2b4] sm:$0xf]
    %v1184 = vld [vmem:[#allocation3 + $0x2b8] sm:$0xff]
    %v1185 = vld [vmem:[#allocation3 + $0x2c0] sm:$0xf]
    %v1186 = vld [vmem:[#allocation3 + $0x2c4] sm:$0xff]
    %v1187 = vld [vmem:[#allocation3 + $0x2cc] sm:$0xf]
    %v1188 = vld [vmem:[#allocation3 + $0x2d0] sm:$0xff]
    %v1189 = vld [vmem:[#allocation3 + $0x2d8] sm:$0xf]
    %v1190 = vld [vmem:[#allocation3 + $0x2dc] sm:$0xff]
    %v1191 = vld [vmem:[#allocation3 + $0x2e4] sm:$0xf]
    %v1192 = vld [vmem:[#allocation3 + $0x2e8] sm:$0xff]
    %v1193 = vld [vmem:[#allocation3 + $0x2f0] sm:$0xf]
    %v1194 = vld [vmem:[#allocation3 + $0x2f4] sm:$0xff]
    %v1195 = vld [vmem:[#allocation3 + $0x2fc] sm:$0xf]
    %v1324 = vunpack.c.l.b16 %v1068
    %v1325 = vunpack.c.h.b16 %v1068
    %v1326 = vunpack.c.l.b16 %v1069
    %v1327 = vunpack.c.l.b16 %v1070
    %v1328 = vunpack.c.h.b16 %v1070
    %v1329 = vunpack.c.l.b16 %v1071
    %v1330 = vunpack.c.l.b16 %v1072
    %v1331 = vunpack.c.h.b16 %v1072
    %v1332 = vunpack.c.l.b16 %v1073
    %v1333 = vunpack.c.l.b16 %v1074
    %v1334 = vunpack.c.h.b16 %v1074
    %v1335 = vunpack.c.l.b16 %v1075
    %v1336 = vunpack.c.l.b16 %v1076
    %v1337 = vunpack.c.h.b16 %v1076
    %v1338 = vunpack.c.l.b16 %v1077
    %v1339 = vunpack.c.l.b16 %v1078
    %v1340 = vunpack.c.h.b16 %v1078
    %v1341 = vunpack.c.l.b16 %v1079
    %v1342 = vunpack.c.l.b16 %v1080
    %v1343 = vunpack.c.h.b16 %v1080
    %v1344 = vunpack.c.l.b16 %v1081
    %v1345 = vunpack.c.l.b16 %v1082
    %v1346 = vunpack.c.h.b16 %v1082
    %v1347 = vunpack.c.l.b16 %v1083
    %v1348 = vunpack.c.l.b16 %v1084
    %v1349 = vunpack.c.h.b16 %v1084
    %v1350 = vunpack.c.l.b16 %v1085
    %v1351 = vunpack.c.l.b16 %v1086
    %v1352 = vunpack.c.h.b16 %v1086
    %v1353 = vunpack.c.l.b16 %v1087
    %v1354 = vunpack.c.l.b16 %v1088
    %v1355 = vunpack.c.h.b16 %v1088
    %v1356 = vunpack.c.l.b16 %v1089
    %v1357 = vunpack.c.l.b16 %v1090
    %v1358 = vunpack.c.h.b16 %v1090
    %v1359 = vunpack.c.l.b16 %v1091
    %v1360 = vunpack.c.l.b16 %v1092
    %v1361 = vunpack.c.h.b16 %v1092
    %v1362 = vunpack.c.l.b16 %v1093
    %v1363 = vunpack.c.l.b16 %v1094
    %v1364 = vunpack.c.h.b16 %v1094
    %v1365 = vunpack.c.l.b16 %v1095
    %v1366 = vunpack.c.l.b16 %v1096
    %v1367 = vunpack.c.h.b16 %v1096
    %v1368 = vunpack.c.l.b16 %v1097
    %v1369 = vunpack.c.l.b16 %v1098
    %v1370 = vunpack.c.h.b16 %v1098
    %v1371 = vunpack.c.l.b16 %v1099
    %v1372 = vunpack.c.l.b16 %v1100
    %v1373 = vunpack.c.h.b16 %v1100
    %v1374 = vunpack.c.l.b16 %v1101
    %v1375 = vunpack.c.l.b16 %v1102
    %v1376 = vunpack.c.h.b16 %v1102
    %v1377 = vunpack.c.l.b16 %v1103
    %v1378 = vunpack.c.l.b16 %v1104
    %v1379 = vunpack.c.h.b16 %v1104
    %v1380 = vunpack.c.l.b16 %v1105
    %v1381 = vunpack.c.l.b16 %v1106
    %v1382 = vunpack.c.h.b16 %v1106
    %v1383 = vunpack.c.l.b16 %v1107
    %v1384 = vunpack.c.l.b16 %v1108
    %v1385 = vunpack.c.h.b16 %v1108
    %v1386 = vunpack.c.l.b16 %v1109
    %v1387 = vunpack.c.l.b16 %v1110
    %v1388 = vunpack.c.h.b16 %v1110
    %v1389 = vunpack.c.l.b16 %v1111
    %v1390 = vunpack.c.l.b16 %v1112
    %v1391 = vunpack.c.h.b16 %v1112
    %v1392 = vunpack.c.l.b16 %v1113
    %v1393 = vunpack.c.l.b16 %v1114
    %v1394 = vunpack.c.h.b16 %v1114
    %v1395 = vunpack.c.l.b16 %v1115
    %v1396 = vunpack.c.l.b16 %v1116
    %v1397 = vunpack.c.h.b16 %v1116
    %v1398 = vunpack.c.l.b16 %v1117
    %v1399 = vunpack.c.l.b16 %v1118
    %v1400 = vunpack.c.h.b16 %v1118
    %v1401 = vunpack.c.l.b16 %v1119
    %v1402 = vunpack.c.l.b16 %v1120
    %v1403 = vunpack.c.h.b16 %v1120
    %v1404 = vunpack.c.l.b16 %v1121
    %v1405 = vunpack.c.l.b16 %v1122
    %v1406 = vunpack.c.h.b16 %v1122
    %v1407 = vunpack.c.l.b16 %v1123
    %v1408 = vunpack.c.l.b16 %v1124
    %v1409 = vunpack.c.h.b16 %v1124
    %v1410 = vunpack.c.l.b16 %v1125
    %v1411 = vunpack.c.l.b16 %v1126
    %v1412 = vunpack.c.h.b16 %v1126
    %v1413 = vunpack.c.l.b16 %v1127
    %v1414 = vunpack.c.l.b16 %v1128
    %v1415 = vunpack.c.h.b16 %v1128
    %v1416 = vunpack.c.l.b16 %v1129
    %v1417 = vunpack.c.l.b16 %v1130
    %v1418 = vunpack.c.h.b16 %v1130
    %v1419 = vunpack.c.l.b16 %v1131
    %v1420 = vunpack.c.l.b16 %v1132
    %v1421 = vunpack.c.h.b16 %v1132
    %v1422 = vunpack.c.l.b16 %v1133
    %v1423 = vunpack.c.l.b16 %v1134
    %v1424 = vunpack.c.h.b16 %v1134
    %v1425 = vunpack.c.l.b16 %v1135
    %v1426 = vunpack.c.l.b16 %v1136
    %v1427 = vunpack.c.h.b16 %v1136
    %v1428 = vunpack.c.l.b16 %v1137
    %v1429 = vunpack.c.l.b16 %v1138
    %v1430 = vunpack.c.h.b16 %v1138
    %v1431 = vunpack.c.l.b16 %v1139
    %v1432 = vunpack.c.l.b16 %v1140
    %v1433 = vunpack.c.h.b16 %v1140
    %v1434 = vunpack.c.l.b16 %v1141
    %v1435 = vunpack.c.l.b16 %v1142
    %v1436 = vunpack.c.h.b16 %v1142
    %v1437 = vunpack.c.l.b16 %v1143
    %v1438 = vunpack.c.l.b16 %v1144
    %v1439 = vunpack.c.h.b16 %v1144
    %v1440 = vunpack.c.l.b16 %v1145
    %v1441 = vunpack.c.l.b16 %v1146
    %v1442 = vunpack.c.h.b16 %v1146
    %v1443 = vunpack.c.l.b16 %v1147
    %v1444 = vunpack.c.l.b16 %v1148
    %v1445 = vunpack.c.h.b16 %v1148
    %v1446 = vunpack.c.l.b16 %v1149
    %v1447 = vunpack.c.l.b16 %v1150
    %v1448 = vunpack.c.h.b16 %v1150
    %v1449 = vunpack.c.l.b16 %v1151
    %v1450 = vunpack.c.l.b16 %v1152
    %v1451 = vunpack.c.h.b16 %v1152
    %v1452 = vunpack.c.l.b16 %v1153
    %v1453 = vunpack.c.l.b16 %v1154
    %v1454 = vunpack.c.h.b16 %v1154
    %v1455 = vunpack.c.l.b16 %v1155
    %v1456 = vunpack.c.l.b16 %v1156
    %v1457 = vunpack.c.h.b16 %v1156
    %v1458 = vunpack.c.l.b16 %v1157
    %v1459 = vunpack.c.l.b16 %v1158
    %v1460 = vunpack.c.h.b16 %v1158
    %v1461 = vunpack.c.l.b16 %v1159
    %v1462 = vunpack.c.l.b16 %v1160
    %v1463 = vunpack.c.h.b16 %v1160
    %v1464 = vunpack.c.l.b16 %v1161
    %v1465 = vunpack.c.l.b16 %v1162
    %v1466 = vunpack.c.h.b16 %v1162
    %v1467 = vunpack.c.l.b16 %v1163
    %v1468 = vunpack.c.l.b16 %v1164
    %v1469 = vunpack.c.h.b16 %v1164
    %v1470 = vunpack.c.l.b16 %v1165
    %v1471 = vunpack.c.l.b16 %v1166
    %v1472 = vunpack.c.h.b16 %v1166
    %v1473 = vunpack.c.l.b16 %v1167
    %v1474 = vunpack.c.l.b16 %v1168
    %v1475 = vunpack.c.h.b16 %v1168
    %v1476 = vunpack.c.l.b16 %v1169
    %v1477 = vunpack.c.l.b16 %v1170
    %v1478 = vunpack.c.h.b16 %v1170
    %v1479 = vunpack.c.l.b16 %v1171
    %v1480 = vunpack.c.l.b16 %v1172
    %v1481 = vunpack.c.h.b16 %v1172
    %v1482 = vunpack.c.l.b16 %v1173
    %v1483 = vunpack.c.l.b16 %v1174
    %v1484 = vunpack.c.h.b16 %v1174
    %v1485 = vunpack.c.l.b16 %v1175
    %v1486 = vunpack.c.l.b16 %v1176
    %v1487 = vunpack.c.h.b16 %v1176
    %v1488 = vunpack.c.l.b16 %v1177
    %v1489 = vunpack.c.l.b16 %v1178
    %v1490 = vunpack.c.h.b16 %v1178
    %v1491 = vunpack.c.l.b16 %v1179
    %v1492 = vunpack.c.l.b16 %v1180
    %v1493 = vunpack.c.h.b16 %v1180
    %v1494 = vunpack.c.l.b16 %v1181
    %v1495 = vunpack.c.l.b16 %v1182
    %v1496 = vunpack.c.h.b16 %v1182
    %v1497 = vunpack.c.l.b16 %v1183
    %v1498 = vunpack.c.l.b16 %v1184
    %v1499 = vunpack.c.h.b16 %v1184
    %v1500 = vunpack.c.l.b16 %v1185
    %v1501 = vunpack.c.l.b16 %v1186
    %v1502 = vunpack.c.h.b16 %v1186
    %v1503 = vunpack.c.l.b16 %v1187
    %v1504 = vunpack.c.l.b16 %v1188
    %v1505 = vunpack.c.h.b16 %v1188
    %v1506 = vunpack.c.l.b16 %v1189
    %v1507 = vunpack.c.l.b16 %v1190
    %v1508 = vunpack.c.h.b16 %v1190
    %v1509 = vunpack.c.l.b16 %v1191
    %v1510 = vunpack.c.l.b16 %v1192
    %v1511 = vunpack.c.h.b16 %v1192
    %v1512 = vunpack.c.l.b16 %v1193
    %v1513 = vunpack.c.l.b16 %v1194
    %v1514 = vunpack.c.h.b16 %v1194
    %v1515 = vunpack.c.l.b16 %v1195
    %v1516 = vpack.c.b16 %v1327, %v1324
    %v1517 = vpack.c.b16 %v1328, %v1325
    %v1518 = vpack.c.b16 %v1329, %v1326
    %v1519 = vpack.c.b16 %v1333, %v1330
    %v1520 = vpack.c.b16 %v1334, %v1331
    %v1521 = vpack.c.b16 %v1335, %v1332
    %v1522 = vpack.c.b16 %v1339, %v1336
    %v1523 = vpack.c.b16 %v1340, %v1337
    %v1524 = vpack.c.b16 %v1341, %v1338
    %v1525 = vpack.c.b16 %v1345, %v1342
    %v1526 = vpack.c.b16 %v1346, %v1343
    %v1527 = vpack.c.b16 %v1347, %v1344
    %v1528 = vpack.c.b16 %v1351, %v1348
    %v1529 = vpack.c.b16 %v1352, %v1349
    %v1530 = vpack.c.b16 %v1353, %v1350
    %v1531 = vpack.c.b16 %v1357, %v1354
    %v1532 = vpack.c.b16 %v1358, %v1355
    %v1533 = vpack.c.b16 %v1359, %v1356
    %v1534 = vpack.c.b16 %v1363, %v1360
    %v1535 = vpack.c.b16 %v1364, %v1361
    %v1536 = vpack.c.b16 %v1365, %v1362
    %v1537 = vpack.c.b16 %v1369, %v1366
    %v1538 = vpack.c.b16 %v1370, %v1367
    %v1539 = vpack.c.b16 %v1371, %v1368
    %v1540 = vpack.c.b16 %v1375, %v1372
    %v1541 = vpack.c.b16 %v1376, %v1373
    %v1542 = vpack.c.b16 %v1377, %v1374
    %v1543 = vpack.c.b16 %v1381, %v1378
    %v1544 = vpack.c.b16 %v1382, %v1379
    %v1545 = vpack.c.b16 %v1383, %v1380
    %v1546 = vpack.c.b16 %v1387, %v1384
    %v1547 = vpack.c.b16 %v1388, %v1385
    %v1548 = vpack.c.b16 %v1389, %v1386
    %v1549 = vpack.c.b16 %v1393, %v1390
    %v1550 = vpack.c.b16 %v1394, %v1391
    %v1551 = vpack.c.b16 %v1395, %v1392
    %v1552 = vpack.c.b16 %v1399, %v1396
    %v1553 = vpack.c.b16 %v1400, %v1397
    %v1554 = vpack.c.b16 %v1401, %v1398
    %v1555 = vpack.c.b16 %v1405, %v1402
    %v1556 = vpack.c.b16 %v1406, %v1403
    %v1557 = vpack.c.b16 %v1407, %v1404
    %v1558 = vpack.c.b16 %v1411, %v1408
    %v1559 = vpack.c.b16 %v1412, %v1409
    %v1560 = vpack.c.b16 %v1413, %v1410
    %v1561 = vpack.c.b16 %v1417, %v1414
    %v1562 = vpack.c.b16 %v1418, %v1415
    %v1563 = vpack.c.b16 %v1419, %v1416
    %v1564 = vpack.c.b16 %v1423, %v1420
    %v1565 = vpack.c.b16 %v1424, %v1421
    %v1566 = vpack.c.b16 %v1425, %v1422
    %v1567 = vpack.c.b16 %v1429, %v1426
    %v1568 = vpack.c.b16 %v1430, %v1427
    %v1569 = vpack.c.b16 %v1431, %v1428
    %v1570 = vpack.c.b16 %v1435, %v1432
    %v1571 = vpack.c.b16 %v1436, %v1433
    %v1572 = vpack.c.b16 %v1437, %v1434
    %v1573 = vpack.c.b16 %v1441, %v1438
    %v1574 = vpack.c.b16 %v1442, %v1439
    %v1575 = vpack.c.b16 %v1443, %v1440
    %v1576 = vpack.c.b16 %v1447, %v1444
    %v1577 = vpack.c.b16 %v1448, %v1445
    %v1578 = vpack.c.b16 %v1449, %v1446
    %v1579 = vpack.c.b16 %v1453, %v1450
    %v1580 = vpack.c.b16 %v1454, %v1451
    %v1581 = vpack.c.b16 %v1455, %v1452
    %v1582 = vpack.c.b16 %v1459, %v1456
    %v1583 = vpack.c.b16 %v1460, %v1457
    %v1584 = vpack.c.b16 %v1461, %v1458
    %v1585 = vpack.c.b16 %v1465, %v1462
    %v1586 = vpack.c.b16 %v1466, %v1463
    %v1587 = vpack.c.b16 %v1467, %v1464
    %v1588 = vpack.c.b16 %v1471, %v1468
    %v1589 = vpack.c.b16 %v1472, %v1469
    %v1590 = vpack.c.b16 %v1473, %v1470
    %v1591 = vpack.c.b16 %v1477, %v1474
    %v1592 = vpack.c.b16 %v1478, %v1475
    %v1593 = vpack.c.b16 %v1479, %v1476
    %v1594 = vpack.c.b16 %v1483, %v1480
    %v1595 = vpack.c.b16 %v1484, %v1481
    %v1596 = vpack.c.b16 %v1485, %v1482
    %v1597 = vpack.c.b16 %v1489, %v1486
    %v1598 = vpack.c.b16 %v1490, %v1487
    %v1599 = vpack.c.b16 %v1491, %v1488
    %v1600 = vpack.c.b16 %v1495, %v1492
    %v1601 = vpack.c.b16 %v1496, %v1493
    %v1602 = vpack.c.b16 %v1497, %v1494
    %v1603 = vpack.c.b16 %v1501, %v1498
    %v1604 = vpack.c.b16 %v1502, %v1499
    %v1605 = vpack.c.b16 %v1503, %v1500
    %v1606 = vpack.c.b16 %v1507, %v1504
    %v1607 = vpack.c.b16 %v1508, %v1505
    %v1608 = vpack.c.b16 %v1509, %v1506
    %v1609 = vpack.c.b16 %v1513, %v1510
    %v1610 = vpack.c.b16 %v1514, %v1511
    %v1611 = vpack.c.b16 %v1515, %v1512
    %1708 = vmatprep.subr.bf16.mxu0 %v1538
    %1709 = vmatpush1.bf16.msra.mxu0 %v1537
    %1710 = vmatprep.subr.bf16.mxu0 %v1535
    %1711 = vmatpush1.bf16.msra.mxu0 %v1534
    %1712 = vmatprep.subr.bf16.mxu0 %v1532
    %1713 = vmatpush1.bf16.msra.mxu0 %v1531
    %1714 = vmatprep.subr.bf16.mxu0 %v1529
    %1715 = vmatpush1.bf16.msra.mxu0 %v1528
    %1716 = vmatprep.subr.bf16.mxu0 %v1526
    %1717 = vmatpush1.bf16.msra.mxu0 %v1525
    %1718 = vmatprep.subr.bf16.mxu0 %v1523
    %1719 = vmatpush1.bf16.msra.mxu0 %v1522
    %1720 = vmatprep.subr.bf16.mxu0 %v1520
    %1721 = vmatpush1.bf16.msra.mxu0 %v1519
    %1722 = vmatprep.subr.bf16.mxu0 %v1517
    %1723 = vmatpush1.bf16.msra.mxu0 %v1516
    %1724 = vmatprep.subr.bf16.mxu0 %v1562
    %1725 = vmatpush2.bf16.msra.mxu0 %v1561
    %1726 = vmatprep.subr.bf16.mxu0 %v1559
    %1727 = vmatpush2.bf16.msra.mxu0 %v1558
    %1728 = vmatprep.subr.bf16.mxu0 %v1556
    %1729 = vmatpush2.bf16.msra.mxu0 %v1555
    %1730 = vmatprep.subr.bf16.mxu0 %v1553
    %1731 = vmatpush2.bf16.msra.mxu0 %v1552
    %1732 = vmatprep.subr.bf16.mxu0 %v1550
    %1733 = vmatpush2.bf16.msra.mxu0 %v1549
    %1734 = vmatprep.subr.bf16.mxu0 %v1547
    %1735 = vmatpush2.bf16.msra.mxu0 %v1546
    %1736 = vmatprep.subr.bf16.mxu0 %v1544
    %1737 = vmatpush2.bf16.msra.mxu0 %v1543
    %1738 = vmatprep.subr.bf16.mxu0 %v1541
    %1739 = vmatpush2.bf16.msra.mxu0 %v1540
    %1740 = vmatprep.mubr.bf16.mxu0 %v1017
    %1741 = vmatmul.mubr.bf16.gmra.mxu0 %v1016
    %v1742 = vpop.f32.mrf.mxu0
    %v1743 = vadd.f32 %v654, %v1742
    %v1744 = vpop.f32.mrf.mxu0
    %v1745 = vadd.f32 %v656, %v1744
    %v1746 = vpop.f32.mrf.mxu0
    %v1747 = vadd.f32 %v658, %v1746
    %v1748 = vpop.f32.mrf.mxu0
    %v1749 = vadd.f32 %v660, %v1748
    %1750 = vmatprep.mubr.bf16.mxu0 %v1021
    %1751 = vmatmul.mubr.bf16.gmra.mxu0 %v1020
    %v1752 = vpop.f32.mrf.mxu0
    %v1753 = vadd.f32 %v664, %v1752
    %v1754 = vpop.f32.mrf.mxu0
    %v1755 = vadd.f32 %v666, %v1754
    %v1756 = vpop.f32.mrf.mxu0
    %v1757 = vadd.f32 %v668, %v1756
    %v1758 = vpop.f32.mrf.mxu0
    %v1759 = vadd.f32 %v670, %v1758
    %1760 = vmatprep.mubr.bf16.mxu0 %v1025
    %1761 = vmatmul.mubr.bf16.gmra.mxu0 %v1024
    %v1762 = vpop.f32.mrf.mxu0
    %v1763 = vadd.f32 %v674, %v1762
    %v1764 = vpop.f32.mrf.mxu0
    %v1765 = vadd.f32 %v676, %v1764
    %v1766 = vpop.f32.mrf.mxu0
    %v1767 = vadd.f32 %v678, %v1766
    %v1768 = vpop.f32.mrf.mxu0
    %v1769 = vadd.f32 %v680, %v1768
    %1770 = vmatprep.mubr.bf16.mxu0 %v1029
    %1771 = vmatmul.mubr.bf16.gmra.mxu0 %v1028
    %v1772 = vpop.f32.mrf.mxu0
    %v1773 = vadd.f32 %v684, %v1772
    %v1774 = vpop.f32.mrf.mxu0
    %v1775 = vadd.f32 %v686, %v1774
    %v1776 = vpop.f32.mrf.mxu0
    %v1777 = vadd.f32 %v688, %v1776
    %v1778 = vpop.f32.mrf.mxu0
    %v1779 = vadd.f32 %v690, %v1778
    %1780 = vmatprep.mubr.bf16.mxu0 %v1033
    %1781 = vmatmul.mubr.bf16.gmra.mxu0 %v1032
    %v1782 = vpop.f32.mrf.mxu0
    %v1783 = vadd.f32 %v694, %v1782
    %v1784 = vpop.f32.mrf.mxu0
    %v1785 = vadd.f32 %v696, %v1784
    %v1786 = vpop.f32.mrf.mxu0
    %v1787 = vadd.f32 %v698, %v1786
    %v1788 = vpop.f32.mrf.mxu0
    %v1789 = vadd.f32 %v700, %v1788
    %1790 = vmatprep.mubr.bf16.mxu0 %v1037
    %1791 = vmatmul.mubr.bf16.gmra.mxu0 %v1036
    %v1792 = vpop.f32.mrf.mxu0
    %v1793 = vadd.f32 %v704, %v1792
    %v1794 = vpop.f32.mrf.mxu0
    %v1795 = vadd.f32 %v706, %v1794
    %v1796 = vpop.f32.mrf.mxu0
    %v1797 = vadd.f32 %v708, %v1796
    %v1798 = vpop.f32.mrf.mxu0
    %v1799 = vadd.f32 %v710, %v1798
    %1800 = vmatprep.mubr.bf16.mxu0 %v1041
    %1801 = vmatmul.mubr.bf16.gmra.mxu0 %v1040
    %v1802 = vpop.f32.mrf.mxu0
    %v1803 = vadd.f32 %v714, %v1802
    %v1804 = vpop.f32.mrf.mxu0
    %v1805 = vadd.f32 %v716, %v1804
    %v1806 = vpop.f32.mrf.mxu0
    %v1807 = vadd.f32 %v718, %v1806
    %v1808 = vpop.f32.mrf.mxu0
    %v1809 = vadd.f32 %v720, %v1808
    %1810 = vmatprep.mubr.bf16.mxu0 %v1045
    %1811 = vmatmul.mubr.bf16.gmra.mxu0 %v1044
    %v1812 = vpop.f32.mrf.mxu0
    %v1813 = vadd.f32 %v724, %v1812
    %v1814 = vpop.f32.mrf.mxu0
    %v1815 = vadd.f32 %v726, %v1814
    %v1816 = vpop.f32.mrf.mxu0
    %v1817 = vadd.f32 %v728, %v1816
    %v1818 = vpop.f32.mrf.mxu0
    %v1819 = vadd.f32 %v730, %v1818
    %1820 = vmatprep.mubr.bf16.mxu0 %v1049
    %1821 = vmatmul.mubr.bf16.gmra.mxu0 %v1048
    %v1822 = vpop.f32.mrf.mxu0
    %v1823 = vadd.f32 %v734, %v1822
    %v1824 = vpop.f32.mrf.mxu0
    %v1825 = vadd.f32 %v736, %v1824
    %v1826 = vpop.f32.mrf.mxu0
    %v1827 = vadd.f32 %v738, %v1826
    %v1828 = vpop.f32.mrf.mxu0
    %v1829 = vadd.f32 %v740, %v1828
    %1830 = vmatprep.mubr.bf16.mxu0 %v1053
    %1831 = vmatmul.mubr.bf16.gmra.mxu0 %v1052
    %v1832 = vpop.f32.mrf.mxu0
    %v1833 = vadd.f32 %v744, %v1832
    %v1834 = vpop.f32.mrf.mxu0
    %v1835 = vadd.f32 %v746, %v1834
    %v1836 = vpop.f32.mrf.mxu0
    %v1837 = vadd.f32 %v748, %v1836
    %v1838 = vpop.f32.mrf.mxu0
    %v1839 = vadd.f32 %v750, %v1838
    %1840 = vmatprep.mubr.bf16.mxu0 %v1057
    %1841 = vmatmul.mubr.bf16.gmra.mxu0 %v1056
    %v1842 = vpop.f32.mrf.mxu0
    %v1843 = vadd.f32 %v754, %v1842
    %v1844 = vpop.f32.mrf.mxu0
    %v1845 = vadd.f32 %v756, %v1844
    %v1846 = vpop.f32.mrf.mxu0
    %v1847 = vadd.f32 %v758, %v1846
    %v1848 = vpop.f32.mrf.mxu0
    %v1849 = vadd.f32 %v760, %v1848
    %1850 = vmatprep.mubr.bf16.mxu0 %v1061
    %1851 = vmatmul.mubr.bf16.gmra.mxu0 %v1060
    %v1852 = vpop.f32.mrf.mxu0
    %v1853 = vadd.f32 %v764, %v1852
    %v1854 = vpop.f32.mrf.mxu0
    %v1855 = vadd.f32 %v766, %v1854
    %v1856 = vpop.f32.mrf.mxu0
    %v1857 = vadd.f32 %v768, %v1856
    %v1858 = vpop.f32.mrf.mxu0
    %v1859 = vadd.f32 %v770, %v1858
    %1860 = vmatprep.mubr.bf16.mxu0 %v1065
    %1861 = vmatmul.mubr.bf16.gmra.mxu0 %v1064
    %v1862 = vpop.f32.mrf.mxu0
    %v1863 = vadd.f32 %v774, %v1862
    %v1864 = vpop.f32.mrf.mxu0
    %v1865 = vadd.f32 %v776, %v1864
    %v1866 = vpop.f32.mrf.mxu0
    %v1867 = vpop.f32.mrf.mxu0
    %1868 = vdwg.mxu0
    %1869 = vmatprep.subr.bf16.mxu0 %v1586
    %1870 = vmatpush1.bf16.msra.mxu0 %v1585
    %1871 = vmatprep.subr.bf16.mxu0 %v1583
    %1872 = vmatpush1.bf16.msra.mxu0 %v1582
    %1873 = vmatprep.subr.bf16.mxu0 %v1580
    %1874 = vmatpush1.bf16.msra.mxu0 %v1579
    %1875 = vmatprep.subr.bf16.mxu0 %v1577
    %1876 = vmatpush1.bf16.msra.mxu0 %v1576
    %1877 = vmatprep.subr.bf16.mxu0 %v1574
    %1878 = vmatpush1.bf16.msra.mxu0 %v1573
    %1879 = vmatprep.subr.bf16.mxu0 %v1571
    %1880 = vmatpush1.bf16.msra.mxu0 %v1570
    %1881 = vmatprep.subr.bf16.mxu0 %v1568
    %1882 = vmatpush1.bf16.msra.mxu0 %v1567
    %1883 = vmatprep.subr.bf16.mxu0 %v1565
    %1884 = vmatpush1.bf16.msra.mxu0 %v1564
    %1885 = vmatprep.subr.bf16.mxu0 %v1610
    %1886 = vmatpush2.bf16.msra.mxu0 %v1609
    %1887 = vmatprep.subr.bf16.mxu0 %v1607
    %1888 = vmatpush2.bf16.msra.mxu0 %v1606
    %1889 = vmatprep.subr.bf16.mxu0 %v1604
    %1890 = vmatpush2.bf16.msra.mxu0 %v1603
    %1891 = vmatprep.subr.bf16.mxu0 %v1601
    %1892 = vmatpush2.bf16.msra.mxu0 %v1600
    %1893 = vmatprep.subr.bf16.mxu0 %v1598
    %1894 = vmatpush2.bf16.msra.mxu0 %v1597
    %1895 = vmatprep.subr.bf16.mxu0 %v1595
    %1896 = vmatpush2.bf16.msra.mxu0 %v1594
    %1897 = vmatprep.subr.bf16.mxu0 %v1592
    %1898 = vmatpush2.bf16.msra.mxu0 %v1591
    %1899 = vmatprep.subr.bf16.mxu0 %v1589
    %1900 = vmatpush2.bf16.msra.mxu0 %v1588
    %1901 = vmatprep.mubr.bf16.mxu0 %v1019
    %1902 = vmatmul.mubr.bf16.gmra.mxu0 %v1018
    %v1903 = vpop.f32.mrf.mxu0
    %v1904 = vadd.f32 %v1743, %v1903
    %v1905 = vpop.f32.mrf.mxu0
    %v1906 = vadd.f32 %v1745, %v1905
    %v1907 = vpop.f32.mrf.mxu0
    %v1908 = vadd.f32 %v1747, %v1907
    %v1909 = vpop.f32.mrf.mxu0
    %v1910 = vadd.f32 %v1749, %v1909
    %1911 = vmatprep.mubr.bf16.mxu0 %v1023
    %1912 = vmatmul.mubr.bf16.gmra.mxu0 %v1022
    %v1913 = vpop.f32.mrf.mxu0
    %v1914 = vadd.f32 %v1753, %v1913
    %v1915 = vpop.f32.mrf.mxu0
    %v1916 = vadd.f32 %v1755, %v1915
    %v1917 = vpop.f32.mrf.mxu0
    %v1918 = vadd.f32 %v1757, %v1917
    %v1919 = vpop.f32.mrf.mxu0
    %v1920 = vadd.f32 %v1759, %v1919
    %1921 = vmatprep.mubr.bf16.mxu0 %v1027
    %1922 = vmatmul.mubr.bf16.gmra.mxu0 %v1026
    %v1923 = vpop.f32.mrf.mxu0
    %v1924 = vadd.f32 %v1763, %v1923
    %v1925 = vpop.f32.mrf.mxu0
    %v1926 = vadd.f32 %v1765, %v1925
    %v1927 = vpop.f32.mrf.mxu0
    %v1928 = vadd.f32 %v1767, %v1927
    %v1929 = vpop.f32.mrf.mxu0
    %v1930 = vadd.f32 %v1769, %v1929
    %1931 = vmatprep.mubr.bf16.mxu0 %v1031
    %1932 = vmatmul.mubr.bf16.gmra.mxu0 %v1030
    %v1933 = vpop.f32.mrf.mxu0
    %v1934 = vadd.f32 %v1773, %v1933
    %v1935 = vpop.f32.mrf.mxu0
    %v1936 = vadd.f32 %v1775, %v1935
    %v1937 = vpop.f32.mrf.mxu0
    %v1938 = vadd.f32 %v1777, %v1937
    %v1939 = vpop.f32.mrf.mxu0
    %v1940 = vadd.f32 %v1779, %v1939
    %1941 = vmatprep.mubr.bf16.mxu0 %v1035
    %1942 = vmatmul.mubr.bf16.gmra.mxu0 %v1034
    %v1943 = vpop.f32.mrf.mxu0
    %v1944 = vadd.f32 %v1783, %v1943
    %v1945 = vpop.f32.mrf.mxu0
    %v1946 = vadd.f32 %v1785, %v1945
    %v1947 = vpop.f32.mrf.mxu0
    %v1948 = vadd.f32 %v1787, %v1947
    %v1949 = vpop.f32.mrf.mxu0
    %v1950 = vadd.f32 %v1789, %v1949
    %1951 = vmatprep.mubr.bf16.mxu0 %v1039
    %1952 = vmatmul.mubr.bf16.gmra.mxu0 %v1038
    %v1953 = vpop.f32.mrf.mxu0
    %v1954 = vadd.f32 %v1793, %v1953
    %v1955 = vpop.f32.mrf.mxu0
    %v1956 = vadd.f32 %v1795, %v1955
    %v1957 = vpop.f32.mrf.mxu0
    %v1958 = vadd.f32 %v1797, %v1957
    %v1959 = vpop.f32.mrf.mxu0
    %v1960 = vadd.f32 %v1799, %v1959
    %1961 = vmatprep.mubr.bf16.mxu0 %v1043
    %1962 = vmatmul.mubr.bf16.gmra.mxu0 %v1042
    %v1963 = vpop.f32.mrf.mxu0
    %v1964 = vadd.f32 %v1803, %v1963
    %v1965 = vpop.f32.mrf.mxu0
    %v1966 = vadd.f32 %v1805, %v1965
    %v1967 = vpop.f32.mrf.mxu0
    %v1968 = vadd.f32 %v1807, %v1967
    %v1969 = vpop.f32.mrf.mxu0
    %v1970 = vadd.f32 %v1809, %v1969
    %1971 = vmatprep.mubr.bf16.mxu0 %v1047
    %1972 = vmatmul.mubr.bf16.gmra.mxu0 %v1046
    %v1973 = vpop.f32.mrf.mxu0
    %v1974 = vadd.f32 %v1813, %v1973
    %v1975 = vpop.f32.mrf.mxu0
    %v1976 = vadd.f32 %v1815, %v1975
    %v1977 = vpop.f32.mrf.mxu0
    %v1978 = vadd.f32 %v1817, %v1977
    %v1979 = vpop.f32.mrf.mxu0
    %v1980 = vadd.f32 %v1819, %v1979
    %1981 = vmatprep.mubr.bf16.mxu0 %v1051
    %1982 = vmatmul.mubr.bf16.gmra.mxu0 %v1050
    %v1983 = vpop.f32.mrf.mxu0
    %v1984 = vadd.f32 %v1823, %v1983
    %v1985 = vpop.f32.mrf.mxu0
    %v1986 = vadd.f32 %v1825, %v1985
    %v1987 = vpop.f32.mrf.mxu0
    %v1988 = vadd.f32 %v1827, %v1987
    %v1989 = vpop.f32.mrf.mxu0
    %v1990 = vadd.f32 %v1829, %v1989
    %1991 = vmatprep.mubr.bf16.mxu0 %v1055
    %1992 = vmatmul.mubr.bf16.gmra.mxu0 %v1054
    %v1993 = vpop.f32.mrf.mxu0
    %v1994 = vadd.f32 %v1833, %v1993
    %v1995 = vpop.f32.mrf.mxu0
    %v1996 = vadd.f32 %v1835, %v1995
    %v1997 = vpop.f32.mrf.mxu0
    %v1998 = vadd.f32 %v1837, %v1997
    %v1999 = vpop.f32.mrf.mxu0
    %v2000 = vadd.f32 %v1839, %v1999
    %2001 = vmatprep.mubr.bf16.mxu0 %v1059
    %2002 = vmatmul.mubr.bf16.gmra.mxu0 %v1058
    %v2003 = vpop.f32.mrf.mxu0
    %v2004 = vadd.f32 %v1843, %v2003
    %v2005 = vpop.f32.mrf.mxu0
    %v2006 = vadd.f32 %v1845, %v2005
    %v2007 = vpop.f32.mrf.mxu0
    %v2008 = vadd.f32 %v1847, %v2007
    %v2009 = vpop.f32.mrf.mxu0
    %v2010 = vadd.f32 %v1849, %v2009
    %2011 = vmatprep.mubr.bf16.mxu0 %v1063
    %2012 = vmatmul.mubr.bf16.gmra.mxu0 %v1062
    %v2013 = vpop.f32.mrf.mxu0
    %v2014 = vadd.f32 %v1853, %v2013
    %v2015 = vpop.f32.mrf.mxu0
    %v2016 = vadd.f32 %v1855, %v2015
    %v2017 = vpop.f32.mrf.mxu0
    %v2018 = vadd.f32 %v1857, %v2017
    %v2019 = vpop.f32.mrf.mxu0
    %v2020 = vadd.f32 %v1859, %v2019
    %2021 = vmatprep.mubr.bf16.mxu0 %v1067
    %2022 = vmatmul.mubr.bf16.gmra.mxu0 %v1066
    %v2023 = vpop.f32.mrf.mxu0
    %v2024 = vadd.f32 %v1863, %v2023
    %v2025 = vpop.f32.mrf.mxu0
    %v2026 = vadd.f32 %v1865, %v2025
    %v2027 = vpop.f32.mrf.mxu0
    %v2028 = vpop.f32.mrf.mxu0
    %2029 = vdwg.mxu0
    %2030 = vmatprep.subr.bf16.mxu0 0
    %2031 = vmatpush1.bf16.msra.mxu0 %v1539
    %2032 = vmatprep.subr.bf16.mxu0 0
    %2033 = vmatpush1.bf16.msra.mxu0 %v1536
    %2034 = vmatprep.subr.bf16.mxu0 0
    %2035 = vmatpush1.bf16.msra.mxu0 %v1533
    %2036 = vmatprep.subr.bf16.mxu0 0
    %2037 = vmatpush1.bf16.msra.mxu0 %v1530
    %2038 = vmatprep.subr.bf16.mxu0 0
    %2039 = vmatpush1.bf16.msra.mxu0 %v1527
    %2040 = vmatprep.subr.bf16.mxu0 0
    %2041 = vmatpush1.bf16.msra.mxu0 %v1524
    %2042 = vmatprep.subr.bf16.mxu0 0
    %2043 = vmatpush1.bf16.msra.mxu0 %v1521
    %2044 = vmatprep.subr.bf16.mxu0 0
    %2045 = vmatpush1.bf16.msra.mxu0 %v1518
    %2046 = vmatprep.subr.bf16.mxu0 0
    %2047 = vmatpush2.bf16.msra.mxu0 %v1563
    %2048 = vmatprep.subr.bf16.mxu0 0
    %2049 = vmatpush2.bf16.msra.mxu0 %v1560
    %2050 = vmatprep.subr.bf16.mxu0 0
    %2051 = vmatpush2.bf16.msra.mxu0 %v1557
    %2052 = vmatprep.subr.bf16.mxu0 0
    %2053 = vmatpush2.bf16.msra.mxu0 %v1554
    %2054 = vmatprep.subr.bf16.mxu0 0
    %2055 = vmatpush2.bf16.msra.mxu0 %v1551
    %2056 = vmatprep.subr.bf16.mxu0 0
    %2057 = vmatpush2.bf16.msra.mxu0 %v1548
    %2058 = vmatprep.subr.bf16.mxu0 0
    %2059 = vmatpush2.bf16.msra.mxu0 %v1545
    %2060 = vmatprep.subr.bf16.mxu0 0
    %2061 = vmatpush2.bf16.msra.mxu0 %v1542
    %2062 = vmatprep.mubr.bf16.mxu0 %v1017
    %2063 = vmatmul.mubr.bf16.gmra.mxu0 %v1016
    %v2064 = vpop.f32.mrf.mxu0
    %v2065 = vadd.f32 %v815, %v2064
    %v2066 = vpop.f32.mrf.mxu0
    %v2067 = vpop.f32.mrf.mxu0
    %v2068 = vadd.f32 %v818, %v2067
    %v2069 = vpop.f32.mrf.mxu0
    %2070 = vmatprep.mubr.bf16.mxu0 %v1021
    %2071 = vmatmul.mubr.bf16.gmra.mxu0 %v1020
    %v2072 = vpop.f32.mrf.mxu0
    %v2073 = vadd.f32 %v823, %v2072
    %v2074 = vpop.f32.mrf.mxu0
    %v2075 = vpop.f32.mrf.mxu0
    %v2076 = vadd.f32 %v826, %v2075
    %v2077 = vpop.f32.mrf.mxu0
    %2078 = vmatprep.mubr.bf16.mxu0 %v1025
    %2079 = vmatmul.mubr.bf16.gmra.mxu0 %v1024
    %v2080 = vpop.f32.mrf.mxu0
    %v2081 = vadd.f32 %v831, %v2080
    %v2082 = vpop.f32.mrf.mxu0
    %v2083 = vpop.f32.mrf.mxu0
    %v2084 = vadd.f32 %v834, %v2083
    %v2085 = vpop.f32.mrf.mxu0
    %2086 = vmatprep.mubr.bf16.mxu0 %v1029
    %2087 = vmatmul.mubr.bf16.gmra.mxu0 %v1028
    %v2088 = vpop.f32.mrf.mxu0
    %v2089 = vadd.f32 %v839, %v2088
    %v2090 = vpop.f32.mrf.mxu0
    %v2091 = vpop.f32.mrf.mxu0
    %v2092 = vadd.f32 %v842, %v2091
    %v2093 = vpop.f32.mrf.mxu0
    %2094 = vmatprep.mubr.bf16.mxu0 %v1033
    %2095 = vmatmul.mubr.bf16.gmra.mxu0 %v1032
    %v2096 = vpop.f32.mrf.mxu0
    %v2097 = vadd.f32 %v847, %v2096
    %v2098 = vpop.f32.mrf.mxu0
    %v2099 = vpop.f32.mrf.mxu0
    %v2100 = vadd.f32 %v850, %v2099
    %v2101 = vpop.f32.mrf.mxu0
    %2102 = vmatprep.mubr.bf16.mxu0 %v1037
    %2103 = vmatmul.mubr.bf16.gmra.mxu0 %v1036
    %v2104 = vpop.f32.mrf.mxu0
    %v2105 = vadd.f32 %v855, %v2104
    %v2106 = vpop.f32.mrf.mxu0
    %v2107 = vpop.f32.mrf.mxu0
    %v2108 = vadd.f32 %v858, %v2107
    %v2109 = vpop.f32.mrf.mxu0
    %2110 = vmatprep.mubr.bf16.mxu0 %v1041
    %2111 = vmatmul.mubr.bf16.gmra.mxu0 %v1040
    %v2112 = vpop.f32.mrf.mxu0
    %v2113 = vadd.f32 %v863, %v2112
    %v2114 = vpop.f32.mrf.mxu0
    %v2115 = vpop.f32.mrf.mxu0
    %v2116 = vadd.f32 %v866, %v2115
    %v2117 = vpop.f32.mrf.mxu0
    %2118 = vmatprep.mubr.bf16.mxu0 %v1045
    %2119 = vmatmul.mubr.bf16.gmra.mxu0 %v1044
    %v2120 = vpop.f32.mrf.mxu0
    %v2121 = vadd.f32 %v871, %v2120
    %v2122 = vpop.f32.mrf.mxu0
    %v2123 = vpop.f32.mrf.mxu0
    %v2124 = vadd.f32 %v874, %v2123
    %v2125 = vpop.f32.mrf.mxu0
    %2126 = vmatprep.mubr.bf16.mxu0 %v1049
    %2127 = vmatmul.mubr.bf16.gmra.mxu0 %v1048
    %v2128 = vpop.f32.mrf.mxu0
    %v2129 = vadd.f32 %v879, %v2128
    %v2130 = vpop.f32.mrf.mxu0
    %v2131 = vpop.f32.mrf.mxu0
    %v2132 = vadd.f32 %v882, %v2131
    %v2133 = vpop.f32.mrf.mxu0
    %2134 = vmatprep.mubr.bf16.mxu0 %v1053
    %2135 = vmatmul.mubr.bf16.gmra.mxu0 %v1052
    %v2136 = vpop.f32.mrf.mxu0
    %v2137 = vadd.f32 %v887, %v2136
    %v2138 = vpop.f32.mrf.mxu0
    %v2139 = vpop.f32.mrf.mxu0
    %v2140 = vadd.f32 %v890, %v2139
    %v2141 = vpop.f32.mrf.mxu0
    %2142 = vmatprep.mubr.bf16.mxu0 %v1057
    %2143 = vmatmul.mubr.bf16.gmra.mxu0 %v1056
    %v2144 = vpop.f32.mrf.mxu0
    %v2145 = vadd.f32 %v895, %v2144
    %v2146 = vpop.f32.mrf.mxu0
    %v2147 = vpop.f32.mrf.mxu0
    %v2148 = vadd.f32 %v898, %v2147
    %v2149 = vpop.f32.mrf.mxu0
    %2150 = vmatprep.mubr.bf16.mxu0 %v1061
    %2151 = vmatmul.mubr.bf16.gmra.mxu0 %v1060
    %v2152 = vpop.f32.mrf.mxu0
    %v2153 = vadd.f32 %v903, %v2152
    %v2154 = vpop.f32.mrf.mxu0
    %v2155 = vpop.f32.mrf.mxu0
    %v2156 = vadd.f32 %v906, %v2155
    %v2157 = vpop.f32.mrf.mxu0
    %2158 = vmatprep.mubr.bf16.mxu0 %v1065
    %2159 = vmatmul.mubr.bf16.gmra.mxu0 %v1064
    %v2160 = vpop.f32.mrf.mxu0
    %v2161 = vadd.f32 %v911, %v2160
    %v2162 = vpop.f32.mrf.mxu0
    %v2163 = vpop.f32.mrf.mxu0
    %v2164 = vpop.f32.mrf.mxu0
    %2165 = vdwg.mxu0
    %2166 = vmatprep.subr.bf16.mxu0 0
    %2167 = vmatpush1.bf16.msra.mxu0 %v1587
    %2168 = vmatprep.subr.bf16.mxu0 0
    %2169 = vmatpush1.bf16.msra.mxu0 %v1584
    %2170 = vmatprep.subr.bf16.mxu0 0
    %2171 = vmatpush1.bf16.msra.mxu0 %v1581
    %2172 = vmatprep.subr.bf16.mxu0 0
    %2173 = vmatpush1.bf16.msra.mxu0 %v1578
    %2174 = vmatprep.subr.bf16.mxu0 0
    %2175 = vmatpush1.bf16.msra.mxu0 %v1575
    %2176 = vmatprep.subr.bf16.mxu0 0
    %2177 = vmatpush1.bf16.msra.mxu0 %v1572
    %2178 = vmatprep.subr.bf16.mxu0 0
    %2179 = vmatpush1.bf16.msra.mxu0 %v1569
    %2180 = vmatprep.subr.bf16.mxu0 0
    %2181 = vmatpush1.bf16.msra.mxu0 %v1566
    %2182 = vmatprep.subr.bf16.mxu0 0
    %2183 = vmatpush2.bf16.msra.mxu0 %v1611
    %2184 = vmatprep.subr.bf16.mxu0 0
    %2185 = vmatpush2.bf16.msra.mxu0 %v1608
    %2186 = vmatprep.subr.bf16.mxu0 0
    %2187 = vmatpush2.bf16.msra.mxu0 %v1605
    %2188 = vmatprep.subr.bf16.mxu0 0
    %2189 = vmatpush2.bf16.msra.mxu0 %v1602
    %2190 = vmatprep.subr.bf16.mxu0 0
    %2191 = vmatpush2.bf16.msra.mxu0 %v1599
    %2192 = vmatprep.subr.bf16.mxu0 0
    %2193 = vmatpush2.bf16.msra.mxu0 %v1596
    %2194 = vmatprep.subr.bf16.mxu0 0
    %2195 = vmatpush2.bf16.msra.mxu0 %v1593
    %2196 = vmatprep.subr.bf16.mxu0 0
    %2197 = vmatpush2.bf16.msra.mxu0 %v1590
    %2198 = vmatprep.mubr.bf16.mxu0 %v1019
    %2199 = vmatmul.mubr.bf16.gmra.mxu0 %v1018
    %v2200 = vpop.f32.mrf.mxu0
    %v2201 = vadd.f32 %v2065, %v2200
    %v2202 = vpop.f32.mrf.mxu0
    %v2203 = vpop.f32.mrf.mxu0
    %v2204 = vadd.f32 %v2068, %v2203
    %v2205 = vpop.f32.mrf.mxu0
    %2206 = vmatprep.mubr.bf16.mxu0 %v1023
    %2207 = vmatmul.mubr.bf16.gmra.mxu0 %v1022
    %v2208 = vpop.f32.mrf.mxu0
    %v2209 = vadd.f32 %v2073, %v2208
    %v2210 = vpop.f32.mrf.mxu0
    %v2211 = vpop.f32.mrf.mxu0
    %v2212 = vadd.f32 %v2076, %v2211
    %v2213 = vpop.f32.mrf.mxu0
    %2214 = vmatprep.mubr.bf16.mxu0 %v1027
    %2215 = vmatmul.mubr.bf16.gmra.mxu0 %v1026
    %v2216 = vpop.f32.mrf.mxu0
    %v2217 = vadd.f32 %v2081, %v2216
    %v2218 = vpop.f32.mrf.mxu0
    %v2219 = vpop.f32.mrf.mxu0
    %v2220 = vadd.f32 %v2084, %v2219
    %v2221 = vpop.f32.mrf.mxu0
    %2222 = vmatprep.mubr.bf16.mxu0 %v1031
    %2223 = vmatmul.mubr.bf16.gmra.mxu0 %v1030
    %v2224 = vpop.f32.mrf.mxu0
    %v2225 = vadd.f32 %v2089, %v2224
    %v2226 = vpop.f32.mrf.mxu0
    %v2227 = vpop.f32.mrf.mxu0
    %v2228 = vadd.f32 %v2092, %v2227
    %v2229 = vpop.f32.mrf.mxu0
    %2230 = vmatprep.mubr.bf16.mxu0 %v1035
    %2231 = vmatmul.mubr.bf16.gmra.mxu0 %v1034
    %v2232 = vpop.f32.mrf.mxu0
    %v2233 = vadd.f32 %v2097, %v2232
    %v2234 = vpop.f32.mrf.mxu0
    %v2235 = vpop.f32.mrf.mxu0
    %v2236 = vadd.f32 %v2100, %v2235
    %v2237 = vpop.f32.mrf.mxu0
    %2238 = vmatprep.mubr.bf16.mxu0 %v1039
    %2239 = vmatmul.mubr.bf16.gmra.mxu0 %v1038
    %v2240 = vpop.f32.mrf.mxu0
    %v2241 = vadd.f32 %v2105, %v2240
    %v2242 = vpop.f32.mrf.mxu0
    %v2243 = vpop.f32.mrf.mxu0
    %v2244 = vadd.f32 %v2108, %v2243
    %v2245 = vpop.f32.mrf.mxu0
    %2246 = vmatprep.mubr.bf16.mxu0 %v1043
    %2247 = vmatmul.mubr.bf16.gmra.mxu0 %v1042
    %v2248 = vpop.f32.mrf.mxu0
    %v2249 = vadd.f32 %v2113, %v2248
    %v2250 = vpop.f32.mrf.mxu0
    %v2251 = vpop.f32.mrf.mxu0
    %v2252 = vadd.f32 %v2116, %v2251
    %v2253 = vpop.f32.mrf.mxu0
    %2254 = vmatprep.mubr.bf16.mxu0 %v1047
    %2255 = vmatmul.mubr.bf16.gmra.mxu0 %v1046
    %v2256 = vpop.f32.mrf.mxu0
    %v2257 = vadd.f32 %v2121, %v2256
    %v2258 = vpop.f32.mrf.mxu0
    %v2259 = vpop.f32.mrf.mxu0
    %v2260 = vadd.f32 %v2124, %v2259
    %v2261 = vpop.f32.mrf.mxu0
    %2262 = vmatprep.mubr.bf16.mxu0 %v1051
    %2263 = vmatmul.mubr.bf16.gmra.mxu0 %v1050
    %v2264 = vpop.f32.mrf.mxu0
    %v2265 = vadd.f32 %v2129, %v2264
    %v2266 = vpop.f32.mrf.mxu0
    %v2267 = vpop.f32.mrf.mxu0
    %v2268 = vadd.f32 %v2132, %v2267
    %v2269 = vpop.f32.mrf.mxu0
    %2270 = vmatprep.mubr.bf16.mxu0 %v1055
    %2271 = vmatmul.mubr.bf16.gmra.mxu0 %v1054
    %v2272 = vpop.f32.mrf.mxu0
    %v2273 = vadd.f32 %v2137, %v2272
    %v2274 = vpop.f32.mrf.mxu0
    %v2275 = vpop.f32.mrf.mxu0
    %v2276 = vadd.f32 %v2140, %v2275
    %v2277 = vpop.f32.mrf.mxu0
    %2278 = vmatprep.mubr.bf16.mxu0 %v1059
    %2279 = vmatmul.mubr.bf16.gmra.mxu0 %v1058
    %v2280 = vpop.f32.mrf.mxu0
    %v2281 = vadd.f32 %v2145, %v2280
    %v2282 = vpop.f32.mrf.mxu0
    %v2283 = vpop.f32.mrf.mxu0
    %v2284 = vadd.f32 %v2148, %v2283
    %v2285 = vpop.f32.mrf.mxu0
    %2286 = vmatprep.mubr.bf16.mxu0 %v1063
    %2287 = vmatmul.mubr.bf16.gmra.mxu0 %v1062
    %v2288 = vpop.f32.mrf.mxu0
    %v2289 = vadd.f32 %v2153, %v2288
    %v2290 = vpop.f32.mrf.mxu0
    %v2291 = vpop.f32.mrf.mxu0
    %v2292 = vadd.f32 %v2156, %v2291
    %v2293 = vpop.f32.mrf.mxu0
    %2294 = vmatprep.mubr.bf16.mxu0 %v1067
    %2295 = vmatmul.mubr.bf16.gmra.mxu0 %v1066
    %v2296 = vpop.f32.mrf.mxu0
    %v2297 = vadd.f32 %v2161, %v2296
    %v2298 = vpop.f32.mrf.mxu0
    %v2299 = vpop.f32.mrf.mxu0
    %v2300 = vpop.f32.mrf.mxu0
    %2301 = vdwg.mxu0
    %v2302 = vmax.f32 %v1904, 0.0
    %v2303 = vmax.f32 %v1906, 0.0
    %v2304 = vmax.f32 %v2201, 0.0
    %v2305 = vmax.f32 %v1908, 0.0
    %v2306 = vmax.f32 %v1910, 0.0
    %v2307 = vmax.f32 %v2204, 0.0
    %v2308 = vmax.f32 %v1914, 0.0
    %v2309 = vmax.f32 %v1916, 0.0
    %v2310 = vmax.f32 %v2209, 0.0
    %v2311 = vmax.f32 %v1918, 0.0
    %v2312 = vmax.f32 %v1920, 0.0
    %v2313 = vmax.f32 %v2212, 0.0
    %v2314 = vmax.f32 %v1924, 0.0
    %v2315 = vmax.f32 %v1926, 0.0
    %v2316 = vmax.f32 %v2217, 0.0
    %v2317 = vmax.f32 %v1928, 0.0
    %v2318 = vmax.f32 %v1930, 0.0
    %v2319 = vmax.f32 %v2220, 0.0
    %v2320 = vmax.f32 %v1934, 0.0
    %v2321 = vmax.f32 %v1936, 0.0
    %v2322 = vmax.f32 %v2225, 0.0
    %v2323 = vmax.f32 %v1938, 0.0
    %v2324 = vmax.f32 %v1940, 0.0
    %v2325 = vmax.f32 %v2228, 0.0
    %v2326 = vmax.f32 %v1944, 0.0
    %v2327 = vmax.f32 %v1946, 0.0
    %v2328 = vmax.f32 %v2233, 0.0
    %v2329 = vmax.f32 %v1948, 0.0
    %v2330 = vmax.f32 %v1950, 0.0
    %v2331 = vmax.f32 %v2236, 0.0
    %v2332 = vmax.f32 %v1954, 0.0
    %v2333 = vmax.f32 %v1956, 0.0
    %v2334 = vmax.f32 %v2241, 0.0
    %v2335 = vmax.f32 %v1958, 0.0
    %v2336 = vmax.f32 %v1960, 0.0
    %v2337 = vmax.f32 %v2244, 0.0
    %v2338 = vmax.f32 %v1964, 0.0
    %v2339 = vmax.f32 %v1966, 0.0
    %v2340 = vmax.f32 %v2249, 0.0
    %v2341 = vmax.f32 %v1968, 0.0
    %v2342 = vmax.f32 %v1970, 0.0
    %v2343 = vmax.f32 %v2252, 0.0
    %v2344 = vmax.f32 %v1974, 0.0
    %v2345 = vmax.f32 %v1976, 0.0
    %v2346 = vmax.f32 %v2257, 0.0
    %v2347 = vmax.f32 %v1978, 0.0
    %v2348 = vmax.f32 %v1980, 0.0
    %v2349 = vmax.f32 %v2260, 0.0
    %v2350 = vmax.f32 %v1984, 0.0
    %v2351 = vmax.f32 %v1986, 0.0
    %v2352 = vmax.f32 %v2265, 0.0
    %v2353 = vmax.f32 %v1988, 0.0
    %v2354 = vmax.f32 %v1990, 0.0
    %v2355 = vmax.f32 %v2268, 0.0
    %v2356 = vmax.f32 %v1994, 0.0
    %v2357 = vmax.f32 %v1996, 0.0
    %v2358 = vmax.f32 %v2273, 0.0
    %v2359 = vmax.f32 %v1998, 0.0
    %v2360 = vmax.f32 %v2000, 0.0
    %v2361 = vmax.f32 %v2276, 0.0
    %v2362 = vmax.f32 %v2004, 0.0
    %v2363 = vmax.f32 %v2006, 0.0
    %v2364 = vmax.f32 %v2281, 0.0
    %v2365 = vmax.f32 %v2008, 0.0
    %v2366 = vmax.f32 %v2010, 0.0
    %v2367 = vmax.f32 %v2284, 0.0
    %v2368 = vmax.f32 %v2014, 0.0
    %v2369 = vmax.f32 %v2016, 0.0
    %v2370 = vmax.f32 %v2289, 0.0
    %v2371 = vmax.f32 %v2018, 0.0
    %v2372 = vmax.f32 %v2020, 0.0
    %v2373 = vmax.f32 %v2292, 0.0
    %v2374 = vmax.f32 %v2024, 0.0
    %v2375 = vmax.f32 %v2026, 0.0
    %v2376 = vmax.f32 %v2297, 0.0
    %v2377 = vld [vmem:[%s3] sm:$0x7]
    %v2379 = vlaneseq
    %v2380 = vshrl.u32 %v2379, 7
    %v2381 = vsub.s32 0, %v2380
    %v2382 = vrot.slane %v2377, %v2381
    %v2383 = vlaneseq
    %v2384 = vshrl.u32 %v2383, 7
    %v2385 = vsub.s32 1, %v2384
    %v2386 = vrot.slane %v2377, %v2385
    %v2387 = vlaneseq
    %v2388 = vshrl.u32 %v2387, 7
    %v2389 = vsub.s32 2, %v2388
    %v2390 = vrot.slane %v2377, %v2389
    %v2394 = vmul.f32 %v2302, %v2382
    %v2395 = vmul.f32 %v2303, %v2386
    %v2396 = vmul.f32 %v2304, %v2390
    %v2397 = vmul.f32 %v2305, %v2382
    %v2398 = vmul.f32 %v2306, %v2386
    %v2399 = vmul.f32 %v2307, %v2390
    %v2400 = vmul.f32 %v2308, %v2382
    %v2401 = vmul.f32 %v2309, %v2386
    %v2402 = vmul.f32 %v2310, %v2390
    %v2403 = vmul.f32 %v2311, %v2382
    %v2404 = vmul.f32 %v2312, %v2386
    %v2405 = vmul.f32 %v2313, %v2390
    %v2406 = vmul.f32 %v2314, %v2382
    %v2407 = vmul.f32 %v2315, %v2386
    %v2408 = vmul.f32 %v2316, %v2390
    %v2409 = vmul.f32 %v2317, %v2382
    %v2410 = vmul.f32 %v2318, %v2386
    %v2411 = vmul.f32 %v2319, %v2390
    %v2412 = vmul.f32 %v2320, %v2382
    %v2413 = vmul.f32 %v2321, %v2386
    %v2414 = vmul.f32 %v2322, %v2390
    %v2415 = vmul.f32 %v2323, %v2382
    %v2416 = vmul.f32 %v2324, %v2386
    %v2417 = vmul.f32 %v2325, %v2390
    %v2418 = vmul.f32 %v2326, %v2382
    %v2419 = vmul.f32 %v2327, %v2386
    %v2420 = vmul.f32 %v2328, %v2390
    %v2421 = vmul.f32 %v2329, %v2382
    %v2422 = vmul.f32 %v2330, %v2386
    %v2423 = vmul.f32 %v2331, %v2390
    %v2424 = vmul.f32 %v2332, %v2382
    %v2425 = vmul.f32 %v2333, %v2386
    %v2426 = vmul.f32 %v2334, %v2390
    %v2427 = vmul.f32 %v2335, %v2382
    %v2428 = vmul.f32 %v2336, %v2386
    %v2429 = vmul.f32 %v2337, %v2390
    %v2430 = vmul.f32 %v2338, %v2382
    %v2431 = vmul.f32 %v2339, %v2386
    %v2432 = vmul.f32 %v2340, %v2390
    %v2433 = vmul.f32 %v2341, %v2382
    %v2434 = vmul.f32 %v2342, %v2386
    %v2435 = vmul.f32 %v2343, %v2390
    %v2436 = vmul.f32 %v2344, %v2382
    %v2437 = vmul.f32 %v2345, %v2386
    %v2438 = vmul.f32 %v2346, %v2390
    %v2439 = vmul.f32 %v2347, %v2382
    %v2440 = vmul.f32 %v2348, %v2386
    %v2441 = vmul.f32 %v2349, %v2390
    %v2442 = vmul.f32 %v2350, %v2382
    %v2443 = vmul.f32 %v2351, %v2386
    %v2444 = vmul.f32 %v2352, %v2390
    %v2445 = vmul.f32 %v2353, %v2382
    %v2446 = vmul.f32 %v2354, %v2386
    %v2447 = vmul.f32 %v2355, %v2390
    %v2448 = vmul.f32 %v2356, %v2382
    %v2449 = vmul.f32 %v2357, %v2386
    %v2450 = vmul.f32 %v2358, %v2390
    %v2451 = vmul.f32 %v2359, %v2382
    %v2452 = vmul.f32 %v2360, %v2386
    %v2453 = vmul.f32 %v2361, %v2390
    %v2454 = vmul.f32 %v2362, %v2382
    %v2455 = vmul.f32 %v2363, %v2386
    %v2456 = vmul.f32 %v2364, %v2390
    %v2457 = vmul.f32 %v2365, %v2382
    %v2458 = vmul.f32 %v2366, %v2386
    %v2459 = vmul.f32 %v2367, %v2390
    %v2460 = vmul.f32 %v2368, %v2382
    %v2461 = vmul.f32 %v2369, %v2386
    %v2462 = vmul.f32 %v2370, %v2390
    %v2463 = vmul.f32 %v2371, %v2382
    %v2464 = vmul.f32 %v2372, %v2386
    %v2465 = vmul.f32 %v2373, %v2390
    %v2466 = vmul.f32 %v2374, %v2382
    %v2467 = vmul.f32 %v2375, %v2386
    %v2468 = vmul.f32 %v2376, %v2390
    %v2469 = vadd.f32 %v2394, %v2395
    %v2470 = vadd.f32 %v2469, %v2396
    %2471 = vadd.xlane.f32.xlu0 %v2470
    %v2472 = vpop.xlane.xlu0 %2471
    %v2473 = vadd.f32 %v2397, %v2398
    %v2474 = vadd.f32 %v2473, %v2399
    %2475 = vadd.xlane.f32.xlu0 %v2474
    %v2476 = vpop.xlane.xlu0 %2475
    %v2477 = vadd.f32 %v2400, %v2401
    %v2478 = vadd.f32 %v2477, %v2402
    %2479 = vadd.xlane.f32.xlu0 %v2478
    %v2480 = vpop.xlane.xlu0 %2479
    %v2481 = vadd.f32 %v2403, %v2404
    %v2482 = vadd.f32 %v2481, %v2405
    %2483 = vadd.xlane.f32.xlu0 %v2482
    %v2484 = vpop.xlane.xlu0 %2483
    %v2485 = vadd.f32 %v2406, %v2407
    %v2486 = vadd.f32 %v2485, %v2408
    %2487 = vadd.xlane.f32.xlu0 %v2486
    %v2488 = vpop.xlane.xlu0 %2487
    %v2489 = vadd.f32 %v2409, %v2410
    %v2490 = vadd.f32 %v2489, %v2411
    %2491 = vadd.xlane.f32.xlu0 %v2490
    %v2492 = vpop.xlane.xlu0 %2491
    %v2493 = vadd.f32 %v2412, %v2413
    %v2494 = vadd.f32 %v2493, %v2414
    %2495 = vadd.xlane.f32.xlu0 %v2494
    %v2496 = vpop.xlane.xlu0 %2495
    %v2497 = vadd.f32 %v2415, %v2416
    %v2498 = vadd.f32 %v2497, %v2417
    %2499 = vadd.xlane.f32.xlu0 %v2498
    %v2500 = vpop.xlane.xlu0 %2499
    %v2501 = vadd.f32 %v2418, %v2419
    %v2502 = vadd.f32 %v2501, %v2420
    %2503 = vadd.xlane.f32.xlu0 %v2502
    %v2504 = vpop.xlane.xlu0 %2503
    %v2505 = vadd.f32 %v2421, %v2422
    %v2506 = vadd.f32 %v2505, %v2423
    %2507 = vadd.xlane.f32.xlu0 %v2506
    %v2508 = vpop.xlane.xlu0 %2507
    %v2509 = vadd.f32 %v2424, %v2425
    %v2510 = vadd.f32 %v2509, %v2426
    %2511 = vadd.xlane.f32.xlu0 %v2510
    %v2512 = vpop.xlane.xlu0 %2511
    %v2513 = vadd.f32 %v2427, %v2428
    %v2514 = vadd.f32 %v2513, %v2429
    %2515 = vadd.xlane.f32.xlu0 %v2514
    %v2516 = vpop.xlane.xlu0 %2515
    %v2517 = vadd.f32 %v2430, %v2431
    %v2518 = vadd.f32 %v2517, %v2432
    %2519 = vadd.xlane.f32.xlu0 %v2518
    %v2520 = vpop.xlane.xlu0 %2519
    %v2521 = vadd.f32 %v2433, %v2434
    %v2522 = vadd.f32 %v2521, %v2435
    %2523 = vadd.xlane.f32.xlu0 %v2522
    %v2524 = vpop.xlane.xlu0 %2523
    %v2525 = vadd.f32 %v2436, %v2437
    %v2526 = vadd.f32 %v2525, %v2438
    %2527 = vadd.xlane.f32.xlu0 %v2526
    %v2528 = vpop.xlane.xlu0 %2527
    %v2529 = vadd.f32 %v2439, %v2440
    %v2530 = vadd.f32 %v2529, %v2441
    %2531 = vadd.xlane.f32.xlu0 %v2530
    %v2532 = vpop.xlane.xlu0 %2531
    %v2533 = vadd.f32 %v2442, %v2443
    %v2534 = vadd.f32 %v2533, %v2444
    %2535 = vadd.xlane.f32.xlu0 %v2534
    %v2536 = vpop.xlane.xlu0 %2535
    %v2537 = vadd.f32 %v2445, %v2446
    %v2538 = vadd.f32 %v2537, %v2447
    %2539 = vadd.xlane.f32.xlu0 %v2538
    %v2540 = vpop.xlane.xlu0 %2539
    %v2541 = vadd.f32 %v2448, %v2449
    %v2542 = vadd.f32 %v2541, %v2450
    %2543 = vadd.xlane.f32.xlu0 %v2542
    %v2544 = vpop.xlane.xlu0 %2543
    %v2545 = vadd.f32 %v2451, %v2452
    %v2546 = vadd.f32 %v2545, %v2453
    %2547 = vadd.xlane.f32.xlu0 %v2546
    %v2548 = vpop.xlane.xlu0 %2547
    %v2549 = vadd.f32 %v2454, %v2455
    %v2550 = vadd.f32 %v2549, %v2456
    %2551 = vadd.xlane.f32.xlu0 %v2550
    %v2552 = vpop.xlane.xlu0 %2551
    %v2553 = vadd.f32 %v2457, %v2458
    %v2554 = vadd.f32 %v2553, %v2459
    %2555 = vadd.xlane.f32.xlu0 %v2554
    %v2556 = vpop.xlane.xlu0 %2555
    %v2557 = vadd.f32 %v2460, %v2461
    %v2558 = vadd.f32 %v2557, %v2462
    %2559 = vadd.xlane.f32.xlu0 %v2558
    %v2560 = vpop.xlane.xlu0 %2559
    %v2561 = vadd.f32 %v2463, %v2464
    %v2562 = vadd.f32 %v2561, %v2465
    %2563 = vadd.xlane.f32.xlu0 %v2562
    %v2564 = vpop.xlane.xlu0 %2563
    %v2565 = vadd.f32 %v2466, %v2467
    %v2566 = vadd.f32 %v2565, %v2468
    %2567 = vadd.xlane.f32.xlu0 %v2566
    %v2568 = vpop.xlane.xlu0 %2567
    %s2569 = sld [smem:[#allocation2]]
    %v2570 = vstv %s2569
    %v2571 = vadd.f32 %v2472, %v2570
    %v2572 = vadd.f32 %v2476, %v2570
    %v2573 = vadd.f32 %v2480, %v2570
    %v2574 = vadd.f32 %v2484, %v2570
    %v2575 = vadd.f32 %v2488, %v2570
    %v2576 = vadd.f32 %v2492, %v2570
    %v2577 = vadd.f32 %v2496, %v2570
    %v2578 = vadd.f32 %v2500, %v2570
    %v2579 = vadd.f32 %v2504, %v2570
    %v2580 = vadd.f32 %v2508, %v2570
    %v2581 = vadd.f32 %v2512, %v2570
    %v2582 = vadd.f32 %v2516, %v2570
    %v2583 = vadd.f32 %v2520, %v2570
    %v2584 = vadd.f32 %v2524, %v2570
    %v2585 = vadd.f32 %v2528, %v2570
    %v2586 = vadd.f32 %v2532, %v2570
    %v2587 = vadd.f32 %v2536, %v2570
    %v2588 = vadd.f32 %v2540, %v2570
    %v2589 = vadd.f32 %v2544, %v2570
    %v2590 = vadd.f32 %v2548, %v2570
    %v2591 = vadd.f32 %v2552, %v2570
    %v2592 = vadd.f32 %v2556, %v2570
    %v2593 = vadd.f32 %v2560, %v2570
    %v2594 = vadd.f32 %v2564, %v2570
    %v2595 = vadd.f32 %v2568, %v2570
    %2596 = vxpose.xlu0.b32.start [1/16] %v2571, 128
    %2597 = vxpose.xlu0.b32.cont [2/16] %v2572, 128
    %2598 = vxpose.xlu0.b32.cont [3/16] %v2573, 128
    %2599 = vxpose.xlu0.b32.cont [4/16] %v2574, 128
    %2600 = vxpose.xlu0.b32.cont [5/16] %v2575, 128
    %2601 = vxpose.xlu0.b32.cont [6/16] %v2576, 128
    %2602 = vxpose.xlu0.b32.cont [7/16] %v2577, 128
    %2603 = vxpose.xlu0.b32.cont [8/16] %v2578, 128
    %2604 = vxpose.xlu0.b32.cont [9/16] %v2579, 128
    %2605 = vxpose.xlu0.b32.cont [10/16] %v2580, 128
    %2606 = vxpose.xlu0.b32.cont [11/16] %v2581, 128
    %2607 = vxpose.xlu0.b32.cont [12/16] %v2582, 128
    %2608 = vxpose.xlu0.b32.cont [13/16] %v2583, 128
    %2609 = vxpose.xlu0.b32.cont [14/16] %v2584, 128
    %2610 = vxpose.xlu0.b32.cont [15/16] %v2585, 128
    %2611 = vxpose.xlu0.b32.end [16/16] %v2586, 128
    %v2612 = vpop.trf.xlu0
    %v2613 = vpop.trf.xlu0
    %v2614 = vpop.trf.xlu0
    %v2615 = vpop.trf.xlu0
    %v2616 = vpop.trf.xlu0
    %v2617 = vpop.trf.xlu0
    %v2618 = vpop.trf.xlu0
    %v2619 = vpop.trf.xlu0
    %v2620 = vpop.trf.xlu0
    %v2621 = vpop.trf.xlu0
    %v2622 = vpop.trf.xlu0
    %v2623 = vpop.trf.xlu0
    %v2624 = vpop.trf.xlu0
    %v2625 = vpop.trf.xlu0
    %v2626 = vpop.trf.xlu0
    %v2627 = vpop.trf.xlu0
    %2628 = vxpose.xlu0.b32.start [1/16] %v2587, 128
    %2629 = vxpose.xlu0.b32.cont [2/16] %v2588, 128
    %2630 = vxpose.xlu0.b32.cont [3/16] %v2589, 128
    %2631 = vxpose.xlu0.b32.cont [4/16] %v2590, 128
    %2632 = vxpose.xlu0.b32.cont [5/16] %v2591, 128
    %2633 = vxpose.xlu0.b32.cont [6/16] %v2592, 128
    %2634 = vxpose.xlu0.b32.cont [7/16] %v2593, 128
    %2635 = vxpose.xlu0.b32.cont [8/16] %v2594, 128
    %2636 = vxpose.xlu0.b32.cont [9/16] %v2595, 128
    %2637 = vxpose.xlu0.b32.cont [10/16] 0.0, 128
    %2638 = vxpose.xlu0.b32.cont [11/16] 0.0, 128
    %2639 = vxpose.xlu0.b32.cont [12/16] 0.0, 128
    %2640 = vxpose.xlu0.b32.cont [13/16] 0.0, 128
    %2641 = vxpose.xlu0.b32.cont [14/16] 0.0, 128
    %2642 = vxpose.xlu0.b32.cont [15/16] 0.0, 128
    %2643 = vxpose.xlu0.b32.end [16/16] 0.0, 128
    %v2644 = vpop.trf.xlu0
    %v2645 = vpop.trf.xlu0
    %v2646 = vpop.trf.xlu0
    %v2647 = vpop.trf.xlu0
    %v2648 = vpop.trf.xlu0
    %v2649 = vpop.trf.xlu0
    %v2650 = vpop.trf.xlu0
    %v2651 = vpop.trf.xlu0
    %v2652 = vpop.trf.xlu0
    %v2653 = vpop.trf.xlu0
    %v2654 = vpop.trf.xlu0
    %v2655 = vpop.trf.xlu0
    %v2656 = vpop.trf.xlu0
    %v2657 = vpop.trf.xlu0
    %v2658 = vpop.trf.xlu0
    %v2659 = vpop.trf.xlu0
    %v2662 = vcombine.low %v2612, %v2644
    %v2664 = vunpack.c.l.s4 1966171168
    %v2665 = vunpack.c.0.s8 %v2664
    %v2666 = vlaneseq
    %v2667 = vshrl.u32 %v2666, 7
    %v2668 = vsub.s32 %v2665, %v2667
    %v2669 = vrot.slane %v2662, %v2668
    %v2671 = vunpack.c.l.s4 1966171168
    %v2672 = vunpack.c.0.s8 %v2671
    %v2673 = vlaneseq
    %v2674 = vshrl.u32 %v2673, 7
    %v2675 = vsub.s32 %v2672, %v2674
    %v2676 = vrot.slane %v2669, %v2675
    %v2678 = vlaneseq
    %vm2679 = vcmp.ge.s32.totalorder %v2678, 0
    %vm2680 = vcmp.lt.s32.totalorder %v2678, 200
    %vm2681 = vmand %vm2679, %vm2680
    %2682 = vst.msk [vmem:[#allocation6] sm:$0x3] %vm2681, %v2676
    // Predicated region
    $region26: #{tpu_custom_call.1} parent=1 // pred_check
      _
    $region27: #{tpu_custom_call.1} parent=1 // pred_check_branch
      %2684 = sbr.rel (0) target = $region29
    $region28: #{tpu_custom_call.1} parent=1 // pred_region
      %s2686 = ssub.s32 32, 32
      %2687 = vsyncadd [#allocation5], %s2686
      %s2689 = sshll.u32 [#allocation6], 4
      %s2690 = int_to_ptr.vmem [resolvable:$true] %s2689
      %2692 = dma.vmem_to_hbm [thread:$0]  %s2690, 32, %s5, [#allocation5]
    $region29: #{tpu_custom_call.1} parent=1 // pred_fallthru
      _
    // Predicated region
    $region30: #{tpu_custom_call.1} parent=1 // pred_check
      _
    $region31: #{tpu_custom_call.1} parent=1 // pred_check_branch
      %2694 = sbr.rel (0) target = $region33
    $region32: #{tpu_custom_call.1} parent=1 // pred_region
      %2695 = dma.done [#allocation5], 32
    $region33: #{tpu_custom_call.1} parent=1 // pred_fallthru
      _
    %2696 = vsyncpa [#allocation4], 1
    %2697 = vsyncpa [#allocation5], 1

</llo_original>
